<compile_context>
chip_gen: v6e
topology: v6e:2x2x1
jax: 0.10.0
libtpu: 0.0.40
codegen_flags: <defaults>
</compile_context>

<pallas_src>
import math

import jax
import jax.numpy as jnp
from jax.experimental import pallas as pl
from jax.experimental.pallas import tpu as pltpu

# ---- small, forward-consistent config --------------------------------------
D_MODEL = 32
NUM_HEADS = 4
D_HEAD = D_MODEL // NUM_HEADS
D_FF = 64
NUM_LAYERS = 2
VOCAB_SIZE = 10
VOCAB_PAD = 128          # lane-dense logits store; sliced back to VOCAB_SIZE outside
SCATTER_MAX_DEGREE = 4
MAX_LENGTH = 6           # positional encoding covers MAX_LENGTH + 2 positions
BATCH = 2
SEQ = 8                  # SEQ <= MAX_LENGTH + 2
MATMUL_DTYPE = jnp.bfloat16   # MXU operand dtype; accumulation stays f32


# =============================================================================
# Fused Pallas kernel: both layers + logits, one batch element per grid step
# =============================================================================
def _encoder_kernel(x_ref, bias_ref, hmask_ref,
                    wqkv_ref, bqkv_ref, wo_ref, bo_ref,
                    lng_ref, lnb_ref,
                    w1_ref, b1_ref, w2_ref, b2_ref,
                    wlog_ref, out_ref):
    """x_ref: (1, S, D) rows of one sequence.  bias_ref: (1, S, S) additive attention
    bias shared across heads.  Weights are stacked over layers, pre-transposed to
    [in, out]; matmul weights are bf16.  out_ref: (1, S, VOCAB_PAD) logits."""
    S, D = x_ref.shape[1], x_ref.shape[2]
    H = NUM_HEADS

    x = x_ref[0]                                        # (S, D) f32
    bias = bias_ref[0]                                  # (S, S) f32
    hmask = hmask_ref[...]                              # (H, D) f32
    hmask_b = hmask.reshape(H, 1, D)                    # hoisted (used per layer)
    bias_t = jnp.broadcast_to(bias, (H, S, S)).reshape(H * S, S)   # (H*S, S), hoisted

    def mm(a, w):
        # bf16 operands, f32 accumulation (native single-pass MXU on v6e/v7x).
        return jnp.dot(a.astype(MATMUL_DTYPE), w.astype(MATMUL_DTYPE),
                       preferred_element_type=jnp.float32)

    def layer_norm(v, g, be):
        # single-pass mean/variance: one pair of cross-lane reductions per call
        mu = jnp.mean(v, axis=-1, keepdims=True)
        var = jnp.mean(v * v, axis=-1, keepdims=True) - mu * mu
        return (v - mu) * jax.lax.rsqrt(var + 1e-5) * g + be

    for l in range(NUM_LAYERS):                         # static unroll over layers
        wqkv = wqkv_ref[l]; bqkv = bqkv_ref[l]
        wo = wo_ref[l];     bo = bo_ref[l]
        g = lng_ref[l];     be = lnb_ref[l]
        w1 = w1_ref[l];     b1 = b1_ref[l]
        w2 = w2_ref[l];     b2 = b2_ref[l]

        # ---- fused QKV projection: one MXU pass.  1/sqrt(d_head) pre-folded into Q. ----
        qkv = mm(x, wqkv) + bqkv                        # (S, 3D) f32
        q = qkv[:, 0:D]
        k = qkv[:, D:2 * D]
        v = qkv[:, 2 * D:3 * D]

        # ---- all heads in ONE pair of matmuls ----
        # Stack head-masked Q rows along the sublane axis: row h*S+s == head h, query s.
        qh = (jnp.broadcast_to(q, (H, S, D)) * hmask_b).reshape(H * S, D)       # (H*S, D)
        scores = jnp.einsum('nd,kd->nk',
                            qh.astype(MATMUL_DTYPE), k.astype(MATMUL_DTYPE),
                            preferred_element_type=jnp.float32) + bias_t        # (H*S, S)
        m = jnp.max(scores, axis=-1, keepdims=True)
        e = jnp.exp(scores - m)
        attn = e * pl.reciprocal(jnp.sum(e, axis=-1, keepdims=True), approx=True)
        ctxh = mm(attn, v)                                                      # (H*S, D)
        # keep only head-h columns from head-h rows, then reduce heads (VPU adds)
        ctx = jnp.sum(ctxh.reshape(H, S, D) * hmask_b, axis=0)                  # (S, D)

        # ---- output projection + residual, shared LayerNorm, FeedForward ----
        x = mm(ctx, wo) + bo + x
        x = layer_norm(x, g, be)
        hdn = jnp.maximum(mm(x, w1) + b1, 0.0)
        ff = mm(hdn, w2) + b2
        x = layer_norm(ff + x, g, be)                   # same LN twice (as in PyTorch module)

    # ---- logits for all positions of this sequence (lane-dense, padded to VOCAB_PAD) ----
    out_ref[0] = mm(x, wlog_ref[...])                   # (S, VOCAB_PAD)


def encoder_fused(x, bias, p):
    B, S, _ = x.shape
    VMEM = pltpu.MemorySpace.VMEM

    def rep(shape):
        zeros = (0,) * len(shape)
        return pl.BlockSpec(shape, lambda b, _z=zeros: _z, memory_space=VMEM)

    # advisory cost estimate so XLA can schedule the custom call against the glue
    flops_layer = (2 * S * D_MODEL * 3 * D_MODEL
                   + 2 * (NUM_HEADS * S) * D_MODEL * S
                   + 2 * (NUM_HEADS * S) * S * D_MODEL
                   + 2 * S * D_MODEL * D_MODEL
                   + 2 * S * D_MODEL * D_FF
                   + 2 * S * D_FF * D_MODEL)
    flops = B * (NUM_LAYERS * flops_layer + 2 * S * D_MODEL * VOCAB_PAD)
    transcendentals = B * NUM_LAYERS * (NUM_HEADS * S * S + NUM_HEADS * S + 4 * S)
    operands = (x, bias, p["head_mask"], p["wqkv"], p["bqkv"], p["wo"], p["bo"],
                p["ln_g"], p["ln_b"], p["w1"], p["b1"], p["w2"], p["b2"],
                p["w_logits_pad"])
    bytes_accessed = sum(int(a.size) * a.dtype.itemsize for a in operands) \
        + B * S * VOCAB_PAD * 4

    return pl.pallas_call(
        _encoder_kernel,
        out_shape=jax.ShapeDtypeStruct((B, S, VOCAB_PAD), jnp.float32),
        grid=(B,),
        in_specs=[
            pl.BlockSpec((1, S, D_MODEL), lambda b: (b, 0, 0), memory_space=VMEM),
            pl.BlockSpec((1, S, S), lambda b: (b, 0, 0), memory_space=VMEM),
            rep((NUM_HEADS, D_MODEL)),
            rep((NUM_LAYERS, D_MODEL, 3 * D_MODEL)),
            rep((NUM_LAYERS, 1, 3 * D_MODEL)),
            rep((NUM_LAYERS, D_MODEL, D_MODEL)),
            rep((NUM_LAYERS, 1, D_MODEL)),
            rep((NUM_LAYERS, 1, D_MODEL)),
            rep((NUM_LAYERS, 1, D_MODEL)),
            rep((NUM_LAYERS, D_MODEL, D_FF)),
            rep((NUM_LAYERS, 1, D_FF)),
            rep((NUM_LAYERS, D_FF, D_MODEL)),
            rep((NUM_LAYERS, 1, D_MODEL)),
            rep((D_MODEL, VOCAB_PAD)),
        ],
        out_specs=pl.BlockSpec((1, S, VOCAB_PAD), lambda b: (b, 0, 0), memory_space=VMEM),
        compiler_params=pltpu.CompilerParams(dimension_semantics=("parallel",)),
        cost_estimate=pl.CostEstimate(flops=flops, transcendentals=transcendentals,
                                      bytes_accessed=bytes_accessed),
    )(x, bias, p["head_mask"],
      p["wqkv"], p["bqkv"], p["wo"], p["bo"],
      p["ln_g"], p["ln_b"],
      p["w1"], p["b1"], p["w2"], p["b2"],
      p["w_logits_pad"])


# =============================================================================
# Parameters (deterministic, synthetic); weights packed/pre-transposed for TPU
# =============================================================================
def make_positional_encoding(d_model, max_len):
    position = jnp.arange(max_len, dtype=jnp.float32)[:, None]
    div_term = jnp.exp(jnp.arange(0, d_model, 2, dtype=jnp.float32)
                       * (-math.log(10000.0) / d_model))
    pe = jnp.zeros((max_len, d_model), jnp.float32)
    pe = pe.at[:, 0::2].set(jnp.sin(position * div_term))
    pe = pe.at[:, 1::2].set(jnp.cos(position * div_term))
    return pe


def init_params(key):
    def nrm(k, shape, scale=0.05):
        return scale * jax.random.normal(k, shape, dtype=jnp.float32)

    keys = iter(jax.random.split(key, 5 + 12 * NUM_LAYERS))
    params = {
        "vocab_emb": nrm(next(keys), (VOCAB_SIZE + 1, D_MODEL)),
        "pe": make_positional_encoding(D_MODEL, MAX_LENGTH + 2),
        "deg_emb": nrm(next(keys), (SCATTER_MAX_DEGREE + 1, D_MODEL)),
        "relation_encoder": jax.random.uniform(next(keys), (3,), dtype=jnp.float32),
        "act_rel_emb": nrm(next(keys), (2, D_MODEL)),
    }
    w_logits = nrm(next(keys), (VOCAB_SIZE, D_MODEL))          # PyTorch [out, in], no bias
    inv_norm = 1.0 / math.sqrt(float(D_HEAD))

    wqkv, bqkv, wo, bo, lng, lnb, w1, b1, w2, b2 = ([] for _ in range(10))
    for _ in range(NUM_LAYERS):
        wq = nrm(next(keys), (D_MODEL, D_MODEL)); bq = nrm(next(keys), (1, D_MODEL))
        wk = nrm(next(keys), (D_MODEL, D_MODEL)); bk = nrm(next(keys), (1, D_MODEL))
        wv = nrm(next(keys), (D_MODEL, D_MODEL)); bv = nrm(next(keys), (1, D_MODEL))
        # pre-transpose to [in, out], fold 1/sqrt(d_head) into Q, fuse QKV -> one (D, 3D) matmul
        wqkv.append(jnp.concatenate([wq.T * inv_norm, wk.T, wv.T], axis=1))
        bqkv.append(jnp.concatenate([bq * inv_norm, bk, bv], axis=1))
        wo.append(nrm(next(keys), (D_MODEL, D_MODEL)).T); bo.append(nrm(next(keys), (1, D_MODEL)))
        lng.append(jnp.ones((1, D_MODEL), jnp.float32))
        lnb.append(jnp.zeros((1, D_MODEL), jnp.float32))
        w1.append(nrm(next(keys), (D_FF, D_MODEL)).T); b1.append(nrm(next(keys), (1, D_FF)))
        w2.append(nrm(next(keys), (D_MODEL, D_FF)).T); b2.append(nrm(next(keys), (1, D_MODEL)))

    w_logits_pad = jnp.zeros((D_MODEL, VOCAB_PAD), jnp.float32).at[:, :VOCAB_SIZE].set(w_logits.T)
    head_mask = (jnp.arange(D_MODEL)[None, :] // D_HEAD
                 == jnp.arange(NUM_HEADS)[:, None]).astype(jnp.float32)          # (H, D)

    params.update(
        wqkv=jnp.stack(wqkv).astype(MATMUL_DTYPE), bqkv=jnp.stack(bqkv),
        wo=jnp.stack(wo).astype(MATMUL_DTYPE), bo=jnp.stack(bo),
        ln_g=jnp.stack(lng), ln_b=jnp.stack(lnb),
        w1=jnp.stack(w1).astype(MATMUL_DTYPE), b1=jnp.stack(b1),
        w2=jnp.stack(w2).astype(MATMUL_DTYPE), b2=jnp.stack(b2),
        w_logits_pad=w_logits_pad.astype(MATMUL_DTYPE),
        head_mask=head_mask,
    )
    return params


# =============================================================================
# Full forward pass (run under jax.jit so all glue + kernel dispatch as one program)
# =============================================================================
def transformer_dso_encoder_forward(params, raw_x, scatter_degree,
                                    parentchild_indices, parent_child_now,
                                    silbing_indices, silbing_now):
    B, S = raw_x.shape
    # embedding + positional + degree encoding (XLA gathers, fused under jit)
    # TODO(synk): could be pulled into the Pallas kernel with PrefetchScalarGridSpec
    # (indices in SMEM + iota masks) if the glue ever shows up in profiles again.
    x = params["vocab_emb"][raw_x]                          # (B, S, D)
    x = x + params["pe"][:S][None, :, :]
    x = x + params["deg_emb"][scatter_degree]
    act = params["act_rel_emb"]
    # NOTE: PyTorch `x[idx] += v` is a non-accumulating index_put; indices here are unique.
    x = x.at[parent_child_now[:, 0], parent_child_now[:, 1]].add(act[0])
    x = x.at[silbing_now[:, 0], silbing_now[:, 1]].add(act[1])

    # additive attention-score bias shared across heads (the `spatial` term)
    rel = params["relation_encoder"]
    bias = jnp.zeros((B, S, S), jnp.float32)
    bias = bias.at[parentchild_indices[:, 0], parentchild_indices[:, 1],
                   parentchild_indices[:, 2]].add(rel[0])
    bias = bias.at[parentchild_indices[:, 0], parentchild_indices[:, 2],
                   parentchild_indices[:, 1]].add(rel[1])
    bias = bias.at[silbing_indices[:, 0], silbing_indices[:, 1],
                   silbing_indices[:, 2]].add(rel[2])
    bias = bias.at[silbing_indices[:, 0], silbing_indices[:, 2],
                   silbing_indices[:, 1]].add(rel[2])

    # fused Pallas kernel: both layers + logits, batch-parallel grid
    logits_all = encoder_fused(x, bias, params)             # (B, S, VOCAB_PAD)
    return logits_all[:, -1, :VOCAB_SIZE]                   # (B, vocab_size)


# =============================================================================
if __name__ == "__main__":
    key = jax.random.PRNGKey(0)
    k_params, k_tok, k_deg = jax.random.split(key, 3)

    params = init_params(k_params)

    raw_x = jax.random.randint(k_tok, (BATCH, SEQ), 0, VOCAB_SIZE + 1, dtype=jnp.int32)
    scatter_degree = jax.random.randint(k_deg, (BATCH, SEQ), 0,
                                        SCATTER_MAX_DEGREE + 1, dtype=jnp.int32)

    parentchild_indices = jnp.array([[0, 1, 2], [1, 3, 4]], dtype=jnp.int32)  # (b, i, j)
    parent_child_now = jnp.array([[0, 2], [1, 4]], dtype=jnp.int32)           # (b, pos)
    silbing_indices = jnp.array([[0, 2, 3], [1, 5, 6]], dtype=jnp.int32)
    silbing_now = jnp.array([[0, 3], [1, 6]], dtype=jnp.int32)

    forward = jax.jit(transformer_dso_encoder_forward)
    logits = forward(params, raw_x, scatter_degree,
                     parentchild_indices, parent_child_now,
                     silbing_indices, silbing_now)
    jax.block_until_ready(logits)

    assert logits.shape == (BATCH, VOCAB_SIZE)
    assert bool(jnp.all(jnp.isfinite(logits)))
    print("KERNEL_OK")
</pallas_src>

<mosaic_0001>
module attributes {stable_mosaic.version = 11 : i64} {
  func.func @_encoder_kernel(%arg0: i32, %arg1: memref<1x8x32xf32, #tpu.memory_space<vmem>>, %arg2: memref<1x8x8xf32, #tpu.memory_space<vmem>>, %arg3: memref<4x32xf32, #tpu.memory_space<vmem>>, %arg4: memref<2x32x96xbf16, #tpu.memory_space<vmem>>, %arg5: memref<2x1x96xf32, #tpu.memory_space<vmem>>, %arg6: memref<2x32x32xbf16, #tpu.memory_space<vmem>>, %arg7: memref<2x1x32xf32, #tpu.memory_space<vmem>>, %arg8: memref<2x1x32xf32, #tpu.memory_space<vmem>>, %arg9: memref<2x1x32xf32, #tpu.memory_space<vmem>>, %arg10: memref<2x32x64xbf16, #tpu.memory_space<vmem>>, %arg11: memref<2x1x64xf32, #tpu.memory_space<vmem>>, %arg12: memref<2x64x32xbf16, #tpu.memory_space<vmem>>, %arg13: memref<2x1x32xf32, #tpu.memory_space<vmem>>, %arg14: memref<32x128xbf16, #tpu.memory_space<vmem>>, %arg15: memref<1x8x128xf32, #tpu.memory_space<vmem>>) attributes {dimension_semantics = [#tpu.dimension_semantics<parallel>], iteration_bounds = array<i64: 2>, scalar_prefetch = 0 : i64, scratch_operands = 0 : i64, tpu.core_type = #tpu.core_type<tc>, window_params = [{transform_indices = @transform_0, window_bounds = array<i64: 1, 8, 32>}, {transform_indices = @transform_1, window_bounds = array<i64: 1, 8, 8>}, {pipeline_mode = #tpu.pipeline_mode<synchronous>, transform_indices = @transform_2, window_bounds = array<i64: 4, 32>}, {pipeline_mode = #tpu.pipeline_mode<synchronous>, transform_indices = @transform_3, window_bounds = array<i64: 2, 32, 96>}, {pipeline_mode = #tpu.pipeline_mode<synchronous>, transform_indices = @transform_4, window_bounds = array<i64: 2, 1, 96>}, {pipeline_mode = #tpu.pipeline_mode<synchronous>, transform_indices = @transform_5, window_bounds = array<i64: 2, 32, 32>}, {pipeline_mode = #tpu.pipeline_mode<synchronous>, transform_indices = @transform_6, window_bounds = array<i64: 2, 1, 32>}, {pipeline_mode = #tpu.pipeline_mode<synchronous>, transform_indices = @transform_7, window_bounds = array<i64: 2, 1, 32>}, {pipeline_mode = #tpu.pipeline_mode<synchronous>, transform_indices = @transform_8, window_bounds = array<i64: 2, 1, 32>}, {pipeline_mode = #tpu.pipeline_mode<synchronous>, transform_indices = @transform_9, window_bounds = array<i64: 2, 32, 64>}, {pipeline_mode = #tpu.pipeline_mode<synchronous>, transform_indices = @transform_10, window_bounds = array<i64: 2, 1, 64>}, {pipeline_mode = #tpu.pipeline_mode<synchronous>, transform_indices = @transform_11, window_bounds = array<i64: 2, 64, 32>}, {pipeline_mode = #tpu.pipeline_mode<synchronous>, transform_indices = @transform_12, window_bounds = array<i64: 2, 1, 32>}, {pipeline_mode = #tpu.pipeline_mode<synchronous>, transform_indices = @transform_13, window_bounds = array<i64: 32, 128>}, {transform_indices = @transform_14, window_bounds = array<i64: 1, 8, 128>}]} {
    %c0 = arith.constant 0 : index
    %c0_0 = arith.constant 0 : index
    %c0_1 = arith.constant 0 : index
    %0 = vector.load %arg1[%c0, %c0_0, %c0_1] : memref<1x8x32xf32, #tpu.memory_space<vmem>>, vector<1x8x32xf32>
    %1 = vector.shape_cast %0 : vector<1x8x32xf32> to vector<8x32xf32>
    %c0_2 = arith.constant 0 : index
    %c0_3 = arith.constant 0 : index
    %c0_4 = arith.constant 0 : index
    %2 = vector.load %arg2[%c0_2, %c0_3, %c0_4] : memref<1x8x8xf32, #tpu.memory_space<vmem>>, vector<1x8x8xf32>
    %3 = vector.shape_cast %2 : vector<1x8x8xf32> to vector<8x8xf32>
    %c0_5 = arith.constant 0 : index
    %c0_6 = arith.constant 0 : index
    %4 = vector.load %arg3[%c0_5, %c0_6] : memref<4x32xf32, #tpu.memory_space<vmem>>, vector<4x32xf32>
    %5 = vector.shape_cast %4 : vector<4x32xf32> to vector<4x1x32xf32>
    %6 = vector.shape_cast %3 : vector<8x8xf32> to vector<1x8x8xf32>
    %7 = vector.broadcast %6 : vector<1x8x8xf32> to vector<4x8x8xf32>
    %8 = vector.shape_cast %7 : vector<4x8x8xf32> to vector<32x8xf32>
    %c0_7 = arith.constant 0 : index
    %c0_8 = arith.constant 0 : index
    %c0_9 = arith.constant 0 : index
    %9 = vector.load %arg4[%c0_7, %c0_8, %c0_9] : memref<2x32x96xbf16, #tpu.memory_space<vmem>>, vector<1x32x96xbf16>
    %10 = vector.shape_cast %9 : vector<1x32x96xbf16> to vector<32x96xbf16>
    %c0_10 = arith.constant 0 : index
    %c0_11 = arith.constant 0 : index
    %c0_12 = arith.constant 0 : index
    %11 = vector.load %arg5[%c0_10, %c0_11, %c0_12] : memref<2x1x96xf32, #tpu.memory_space<vmem>>, vector<1x1x96xf32>
    %12 = vector.shape_cast %11 : vector<1x1x96xf32> to vector<1x96xf32>
    %c0_13 = arith.constant 0 : index
    %c0_14 = arith.constant 0 : index
    %c0_15 = arith.constant 0 : index
    %13 = vector.load %arg6[%c0_13, %c0_14, %c0_15] : memref<2x32x32xbf16, #tpu.memory_space<vmem>>, vector<1x32x32xbf16>
    %14 = vector.shape_cast %13 : vector<1x32x32xbf16> to vector<32x32xbf16>
    %c0_16 = arith.constant 0 : index
    %c0_17 = arith.constant 0 : index
    %c0_18 = arith.constant 0 : index
    %15 = vector.load %arg7[%c0_16, %c0_17, %c0_18] : memref<2x1x32xf32, #tpu.memory_space<vmem>>, vector<1x1x32xf32>
    %16 = vector.shape_cast %15 : vector<1x1x32xf32> to vector<1x32xf32>
    %c0_19 = arith.constant 0 : index
    %c0_20 = arith.constant 0 : index
    %c0_21 = arith.constant 0 : index
    %17 = vector.load %arg8[%c0_19, %c0_20, %c0_21] : memref<2x1x32xf32, #tpu.memory_space<vmem>>, vector<1x1x32xf32>
    %18 = vector.shape_cast %17 : vector<1x1x32xf32> to vector<1x32xf32>
    %c0_22 = arith.constant 0 : index
    %c0_23 = arith.constant 0 : index
    %c0_24 = arith.constant 0 : index
    %19 = vector.load %arg9[%c0_22, %c0_23, %c0_24] : memref<2x1x32xf32, #tpu.memory_space<vmem>>, vector<1x1x32xf32>
    %20 = vector.shape_cast %19 : vector<1x1x32xf32> to vector<1x32xf32>
    %c0_25 = arith.constant 0 : index
    %c0_26 = arith.constant 0 : index
    %c0_27 = arith.constant 0 : index
    %21 = vector.load %arg10[%c0_25, %c0_26, %c0_27] : memref<2x32x64xbf16, #tpu.memory_space<vmem>>, vector<1x32x64xbf16>
    %22 = vector.shape_cast %21 : vector<1x32x64xbf16> to vector<32x64xbf16>
    %c0_28 = arith.constant 0 : index
    %c0_29 = arith.constant 0 : index
    %c0_30 = arith.constant 0 : index
    %23 = vector.load %arg11[%c0_28, %c0_29, %c0_30] : memref<2x1x64xf32, #tpu.memory_space<vmem>>, vector<1x1x64xf32>
    %24 = vector.shape_cast %23 : vector<1x1x64xf32> to vector<1x64xf32>
    %c0_31 = arith.constant 0 : index
    %c0_32 = arith.constant 0 : index
    %c0_33 = arith.constant 0 : index
    %25 = vector.load %arg12[%c0_31, %c0_32, %c0_33] : memref<2x64x32xbf16, #tpu.memory_space<vmem>>, vector<1x64x32xbf16>
    %26 = vector.shape_cast %25 : vector<1x64x32xbf16> to vector<64x32xbf16>
    %c0_34 = arith.constant 0 : index
    %c0_35 = arith.constant 0 : index
    %c0_36 = arith.constant 0 : index
    %27 = vector.load %arg13[%c0_34, %c0_35, %c0_36] : memref<2x1x32xf32, #tpu.memory_space<vmem>>, vector<1x1x32xf32>
    %28 = vector.shape_cast %27 : vector<1x1x32xf32> to vector<1x32xf32>
    %29 = arith.truncf %1 : vector<8x32xf32> to vector<8x32xbf16>
    %cst = arith.constant dense<0.000000e+00> : vector<8x96xf32>
    %30 = tpu.matmul %29, %10, %cst {dimension_numbers = #tpu.dot_dimension_numbers<[1], [0], [0], [1], [0, 0, 1, 1], [], []>} : vector<8x32xbf16>, vector<32x96xbf16>, vector<8x96xf32> -> vector<8x96xf32>
    %31 = vector.broadcast %12 : vector<1x96xf32> to vector<8x96xf32>
    %32 = arith.addf %30, %31 : vector<8x96xf32>
    %33 = vector.extract_strided_slice %32 {offsets = [0, 0], sizes = [8, 32], strides = [1, 1]} : vector<8x96xf32> to vector<8x32xf32>
    %34 = vector.extract_strided_slice %32 {offsets = [0, 32], sizes = [8, 32], strides = [1, 1]} : vector<8x96xf32> to vector<8x32xf32>
    %35 = vector.extract_strided_slice %32 {offsets = [0, 64], sizes = [8, 32], strides = [1, 1]} : vector<8x96xf32> to vector<8x32xf32>
    %36 = vector.shape_cast %33 : vector<8x32xf32> to vector<1x8x32xf32>
    %37 = vector.broadcast %36 : vector<1x8x32xf32> to vector<4x8x32xf32>
    %38 = vector.broadcast %5 : vector<4x1x32xf32> to vector<4x8x32xf32>
    %39 = arith.mulf %37, %38 : vector<4x8x32xf32>
    %40 = vector.shape_cast %39 : vector<4x8x32xf32> to vector<32x32xf32>
    %41 = arith.truncf %40 : vector<32x32xf32> to vector<32x32xbf16>
    %42 = arith.truncf %34 : vector<8x32xf32> to vector<8x32xbf16>
    "tpu.trace_start"() <{level = 10 : i32, message = "nd,kd->nk"}> : () -> ()
    %cst_37 = arith.constant dense<0.000000e+00> : vector<32x8xf32>
    %43 = tpu.matmul %41, %42, %cst_37 {dimension_numbers = #tpu.dot_dimension_numbers<[1], [1], [0], [0], [0, 0, 1, 0], [], []>} : vector<32x32xbf16>, vector<8x32xbf16>, vector<32x8xf32> -> vector<32x8xf32>
    "tpu.trace_stop"() : () -> ()
    %44 = arith.addf %43, %8 : vector<32x8xf32>
    %cst_38 = arith.constant dense<0xFF800000> : vector<32xf32>
    %45 = vector.multi_reduction <maximumf>, %44, %cst_38 [1] : vector<32x8xf32> to vector<32xf32>
    %46 = vector.shape_cast %45 : vector<32xf32> to vector<32x1xf32>
    %47 = vector.broadcast %46 : vector<32x1xf32> to vector<32x8xf32>
    %48 = arith.subf %44, %47 : vector<32x8xf32>
    %49 = math.exp %48 : vector<32x8xf32>
    %cst_39 = arith.constant dense<0.000000e+00> : vector<32xf32>
    %50 = vector.multi_reduction <add>, %49, %cst_39 [1] : vector<32x8xf32> to vector<32xf32>
    %51 = vector.shape_cast %50 : vector<32xf32> to vector<32x1xf32>
    %52 = tpu.reciprocal %51 {approx = true} : vector<32x1xf32> -> vector<32x1xf32>
    %53 = vector.broadcast %52 : vector<32x1xf32> to vector<32x8xf32>
    %54 = arith.mulf %49, %53 : vector<32x8xf32>
    %55 = arith.truncf %54 : vector<32x8xf32> to vector<32x8xbf16>
    %56 = arith.truncf %35 : vector<8x32xf32> to vector<8x32xbf16>
    %cst_40 = arith.constant dense<0.000000e+00> : vector<32x32xf32>
    %57 = tpu.matmul %55, %56, %cst_40 {dimension_numbers = #tpu.dot_dimension_numbers<[1], [0], [0], [1], [0, 0, 1, 1], [], []>} : vector<32x8xbf16>, vector<8x32xbf16>, vector<32x32xf32> -> vector<32x32xf32>
    %58 = vector.shape_cast %57 : vector<32x32xf32> to vector<4x8x32xf32>
    %59 = vector.broadcast %5 : vector<4x1x32xf32> to vector<4x8x32xf32>
    %60 = arith.mulf %58, %59 : vector<4x8x32xf32>
    %cst_41 = arith.constant dense<0.000000e+00> : vector<8x32xf32>
    %61 = vector.multi_reduction <add>, %60, %cst_41 [0] : vector<4x8x32xf32> to vector<8x32xf32>
    %62 = arith.truncf %61 : vector<8x32xf32> to vector<8x32xbf16>
    %cst_42 = arith.constant dense<0.000000e+00> : vector<8x32xf32>
    %63 = tpu.matmul %62, %14, %cst_42 {dimension_numbers = #tpu.dot_dimension_numbers<[1], [0], [0], [1], [0, 0, 1, 1], [], []>} : vector<8x32xbf16>, vector<32x32xbf16>, vector<8x32xf32> -> vector<8x32xf32>
    %64 = vector.broadcast %16 : vector<1x32xf32> to vector<8x32xf32>
    %65 = arith.addf %63, %64 : vector<8x32xf32>
    %66 = arith.addf %65, %1 : vector<8x32xf32>
    %cst_43 = arith.constant dense<0.000000e+00> : vector<8xf32>
    %67 = vector.multi_reduction <add>, %66, %cst_43 [1] : vector<8x32xf32> to vector<8xf32>
    %68 = vector.shape_cast %67 : vector<8xf32> to vector<8x1xf32>
    %cst_44 = arith.constant 3.200000e+01 : f32
    %69 = vector.broadcast %cst_44 : f32 to vector<8x1xf32>
    %70 = arith.divf %68, %69 : vector<8x1xf32>
    %71 = arith.mulf %66, %66 : vector<8x32xf32>
    %cst_45 = arith.constant dense<0.000000e+00> : vector<8xf32>
    %72 = vector.multi_reduction <add>, %71, %cst_45 [1] : vector<8x32xf32> to vector<8xf32>
    %73 = vector.shape_cast %72 : vector<8xf32> to vector<8x1xf32>
    %cst_46 = arith.constant 3.200000e+01 : f32
    %74 = vector.broadcast %cst_46 : f32 to vector<8x1xf32>
    %75 = arith.divf %73, %74 : vector<8x1xf32>
    %76 = arith.mulf %70, %70 : vector<8x1xf32>
    %77 = arith.subf %75, %76 : vector<8x1xf32>
    %78 = vector.broadcast %70 : vector<8x1xf32> to vector<8x32xf32>
    %79 = arith.subf %66, %78 : vector<8x32xf32>
    %cst_47 = arith.constant 9.99999974E-6 : f32
    %80 = vector.broadcast %cst_47 : f32 to vector<8x1xf32>
    %81 = arith.addf %77, %80 : vector<8x1xf32>
    %82 = math.rsqrt %81 : vector<8x1xf32>
    %83 = vector.broadcast %82 : vector<8x1xf32> to vector<8x32xf32>
    %84 = arith.mulf %79, %83 : vector<8x32xf32>
    %85 = vector.broadcast %18 : vector<1x32xf32> to vector<8x32xf32>
    %86 = arith.mulf %84, %85 : vector<8x32xf32>
    %87 = vector.broadcast %20 : vector<1x32xf32> to vector<8x32xf32>
    %88 = arith.addf %86, %87 : vector<8x32xf32>
    %89 = arith.truncf %88 : vector<8x32xf32> to vector<8x32xbf16>
    %cst_48 = arith.constant dense<0.000000e+00> : vector<8x64xf32>
    %90 = tpu.matmul %89, %22, %cst_48 {dimension_numbers = #tpu.dot_dimension_numbers<[1], [0], [0], [1], [0, 0, 1, 1], [], []>} : vector<8x32xbf16>, vector<32x64xbf16>, vector<8x64xf32> -> vector<8x64xf32>
    %91 = vector.broadcast %24 : vector<1x64xf32> to vector<8x64xf32>
    %92 = arith.addf %90, %91 : vector<8x64xf32>
    %cst_49 = arith.constant 0.000000e+00 : f32
    %93 = vector.broadcast %cst_49 : f32 to vector<8x64xf32>
    %94 = arith.maximumf %92, %93 : vector<8x64xf32>
    %95 = arith.truncf %94 : vector<8x64xf32> to vector<8x64xbf16>
    %cst_50 = arith.constant dense<0.000000e+00> : vector<8x32xf32>
    %96 = tpu.matmul %95, %26, %cst_50 {dimension_numbers = #tpu.dot_dimension_numbers<[1], [0], [0], [1], [0, 0, 1, 1], [], []>} : vector<8x64xbf16>, vector<64x32xbf16>, vector<8x32xf32> -> vector<8x32xf32>
    %97 = vector.broadcast %28 : vector<1x32xf32> to vector<8x32xf32>
    %98 = arith.addf %96, %97 : vector<8x32xf32>
    %99 = arith.addf %98, %88 : vector<8x32xf32>
    %cst_51 = arith.constant dense<0.000000e+00> : vector<8xf32>
    %100 = vector.multi_reduction <add>, %99, %cst_51 [1] : vector<8x32xf32> to vector<8xf32>
    %101 = vector.shape_cast %100 : vector<8xf32> to vector<8x1xf32>
    %cst_52 = arith.constant 3.200000e+01 : f32
    %102 = vector.broadcast %cst_52 : f32 to vector<8x1xf32>
    %103 = arith.divf %101, %102 : vector<8x1xf32>
    %104 = arith.mulf %99, %99 : vector<8x32xf32>
    %cst_53 = arith.constant dense<0.000000e+00> : vector<8xf32>
    %105 = vector.multi_reduction <add>, %104, %cst_53 [1] : vector<8x32xf32> to vector<8xf32>
    %106 = vector.shape_cast %105 : vector<8xf32> to vector<8x1xf32>
    %cst_54 = arith.constant 3.200000e+01 : f32
    %107 = vector.broadcast %cst_54 : f32 to vector<8x1xf32>
    %108 = arith.divf %106, %107 : vector<8x1xf32>
    %109 = arith.mulf %103, %103 : vector<8x1xf32>
    %110 = arith.subf %108, %109 : vector<8x1xf32>
    %111 = vector.broadcast %103 : vector<8x1xf32> to vector<8x32xf32>
    %112 = arith.subf %99, %111 : vector<8x32xf32>
    %cst_55 = arith.constant 9.99999974E-6 : f32
    %113 = vector.broadcast %cst_55 : f32 to vector<8x1xf32>
    %114 = arith.addf %110, %113 : vector<8x1xf32>
    %115 = math.rsqrt %114 : vector<8x1xf32>
    %116 = vector.broadcast %115 : vector<8x1xf32> to vector<8x32xf32>
    %117 = arith.mulf %112, %116 : vector<8x32xf32>
    %118 = vector.broadcast %18 : vector<1x32xf32> to vector<8x32xf32>
    %119 = arith.mulf %117, %118 : vector<8x32xf32>
    %120 = vector.broadcast %20 : vector<1x32xf32> to vector<8x32xf32>
    %121 = arith.addf %119, %120 : vector<8x32xf32>
    %c1 = arith.constant 1 : index
    %c0_56 = arith.constant 0 : index
    %c0_57 = arith.constant 0 : index
    %122 = vector.load %arg4[%c1, %c0_56, %c0_57] : memref<2x32x96xbf16, #tpu.memory_space<vmem>>, vector<1x32x96xbf16>
    %123 = vector.shape_cast %122 : vector<1x32x96xbf16> to vector<32x96xbf16>
    %c1_58 = arith.constant 1 : index
    %c0_59 = arith.constant 0 : index
    %c0_60 = arith.constant 0 : index
    %124 = vector.load %arg5[%c1_58, %c0_59, %c0_60] : memref<2x1x96xf32, #tpu.memory_space<vmem>>, vector<1x1x96xf32>
    %125 = vector.shape_cast %124 : vector<1x1x96xf32> to vector<1x96xf32>
    %c1_61 = arith.constant 1 : index
    %c0_62 = arith.constant 0 : index
    %c0_63 = arith.constant 0 : index
    %126 = vector.load %arg6[%c1_61, %c0_62, %c0_63] : memref<2x32x32xbf16, #tpu.memory_space<vmem>>, vector<1x32x32xbf16>
    %127 = vector.shape_cast %126 : vector<1x32x32xbf16> to vector<32x32xbf16>
    %c1_64 = arith.constant 1 : index
    %c0_65 = arith.constant 0 : index
    %c0_66 = arith.constant 0 : index
    %128 = vector.load %arg7[%c1_64, %c0_65, %c0_66] : memref<2x1x32xf32, #tpu.memory_space<vmem>>, vector<1x1x32xf32>
    %129 = vector.shape_cast %128 : vector<1x1x32xf32> to vector<1x32xf32>
    %c1_67 = arith.constant 1 : index
    %c0_68 = arith.constant 0 : index
    %c0_69 = arith.constant 0 : index
    %130 = vector.load %arg8[%c1_67, %c0_68, %c0_69] : memref<2x1x32xf32, #tpu.memory_space<vmem>>, vector<1x1x32xf32>
    %131 = vector.shape_cast %130 : vector<1x1x32xf32> to vector<1x32xf32>
    %c1_70 = arith.constant 1 : index
    %c0_71 = arith.constant 0 : index
    %c0_72 = arith.constant 0 : index
    %132 = vector.load %arg9[%c1_70, %c0_71, %c0_72] : memref<2x1x32xf32, #tpu.memory_space<vmem>>, vector<1x1x32xf32>
    %133 = vector.shape_cast %132 : vector<1x1x32xf32> to vector<1x32xf32>
    %c1_73 = arith.constant 1 : index
    %c0_74 = arith.constant 0 : index
    %c0_75 = arith.constant 0 : index
    %134 = vector.load %arg10[%c1_73, %c0_74, %c0_75] : memref<2x32x64xbf16, #tpu.memory_space<vmem>>, vector<1x32x64xbf16>
    %135 = vector.shape_cast %134 : vector<1x32x64xbf16> to vector<32x64xbf16>
    %c1_76 = arith.constant 1 : index
    %c0_77 = arith.constant 0 : index
    %c0_78 = arith.constant 0 : index
    %136 = vector.load %arg11[%c1_76, %c0_77, %c0_78] : memref<2x1x64xf32, #tpu.memory_space<vmem>>, vector<1x1x64xf32>
    %137 = vector.shape_cast %136 : vector<1x1x64xf32> to vector<1x64xf32>
    %c1_79 = arith.constant 1 : index
    %c0_80 = arith.constant 0 : index
    %c0_81 = arith.constant 0 : index
    %138 = vector.load %arg12[%c1_79, %c0_80, %c0_81] : memref<2x64x32xbf16, #tpu.memory_space<vmem>>, vector<1x64x32xbf16>
    %139 = vector.shape_cast %138 : vector<1x64x32xbf16> to vector<64x32xbf16>
    %c1_82 = arith.constant 1 : index
    %c0_83 = arith.constant 0 : index
    %c0_84 = arith.constant 0 : index
    %140 = vector.load %arg13[%c1_82, %c0_83, %c0_84] : memref<2x1x32xf32, #tpu.memory_space<vmem>>, vector<1x1x32xf32>
    %141 = vector.shape_cast %140 : vector<1x1x32xf32> to vector<1x32xf32>
    %142 = arith.truncf %121 : vector<8x32xf32> to vector<8x32xbf16>
    %cst_85 = arith.constant dense<0.000000e+00> : vector<8x96xf32>
    %143 = tpu.matmul %142, %123, %cst_85 {dimension_numbers = #tpu.dot_dimension_numbers<[1], [0], [0], [1], [0, 0, 1, 1], [], []>} : vector<8x32xbf16>, vector<32x96xbf16>, vector<8x96xf32> -> vector<8x96xf32>
    %144 = vector.broadcast %125 : vector<1x96xf32> to vector<8x96xf32>
    %145 = arith.addf %143, %144 : vector<8x96xf32>
    %146 = vector.extract_strided_slice %145 {offsets = [0, 0], sizes = [8, 32], strides = [1, 1]} : vector<8x96xf32> to vector<8x32xf32>
    %147 = vector.extract_strided_slice %145 {offsets = [0, 32], sizes = [8, 32], strides = [1, 1]} : vector<8x96xf32> to vector<8x32xf32>
    %148 = vector.extract_strided_slice %145 {offsets = [0, 64], sizes = [8, 32], strides = [1, 1]} : vector<8x96xf32> to vector<8x32xf32>
    %149 = vector.shape_cast %146 : vector<8x32xf32> to vector<1x8x32xf32>
    %150 = vector.broadcast %149 : vector<1x8x32xf32> to vector<4x8x32xf32>
    %151 = vector.broadcast %5 : vector<4x1x32xf32> to vector<4x8x32xf32>
    %152 = arith.mulf %150, %151 : vector<4x8x32xf32>
    %153 = vector.shape_cast %152 : vector<4x8x32xf32> to vector<32x32xf32>
    %154 = arith.truncf %153 : vector<32x32xf32> to vector<32x32xbf16>
    %155 = arith.truncf %147 : vector<8x32xf32> to vector<8x32xbf16>
    "tpu.trace_start"() <{level = 10 : i32, message = "nd,kd->nk"}> : () -> ()
    %cst_86 = arith.constant dense<0.000000e+00> : vector<32x8xf32>
    %156 = tpu.matmul %154, %155, %cst_86 {dimension_numbers = #tpu.dot_dimension_numbers<[1], [1], [0], [0], [0, 0, 1, 0], [], []>} : vector<32x32xbf16>, vector<8x32xbf16>, vector<32x8xf32> -> vector<32x8xf32>
    "tpu.trace_stop"() : () -> ()
    %157 = arith.addf %156, %8 : vector<32x8xf32>
    %cst_87 = arith.constant dense<0xFF800000> : vector<32xf32>
    %158 = vector.multi_reduction <maximumf>, %157, %cst_87 [1] : vector<32x8xf32> to vector<32xf32>
    %159 = vector.shape_cast %158 : vector<32xf32> to vector<32x1xf32>
    %160 = vector.broadcast %159 : vector<32x1xf32> to vector<32x8xf32>
    %161 = arith.subf %157, %160 : vector<32x8xf32>
    %162 = math.exp %161 : vector<32x8xf32>
    %cst_88 = arith.constant dense<0.000000e+00> : vector<32xf32>
    %163 = vector.multi_reduction <add>, %162, %cst_88 [1] : vector<32x8xf32> to vector<32xf32>
    %164 = vector.shape_cast %163 : vector<32xf32> to vector<32x1xf32>
    %165 = tpu.reciprocal %164 {approx = true} : vector<32x1xf32> -> vector<32x1xf32>
    %166 = vector.broadcast %165 : vector<32x1xf32> to vector<32x8xf32>
    %167 = arith.mulf %162, %166 : vector<32x8xf32>
    %168 = arith.truncf %167 : vector<32x8xf32> to vector<32x8xbf16>
    %169 = arith.truncf %148 : vector<8x32xf32> to vector<8x32xbf16>
    %cst_89 = arith.constant dense<0.000000e+00> : vector<32x32xf32>
    %170 = tpu.matmul %168, %169, %cst_89 {dimension_numbers = #tpu.dot_dimension_numbers<[1], [0], [0], [1], [0, 0, 1, 1], [], []>} : vector<32x8xbf16>, vector<8x32xbf16>, vector<32x32xf32> -> vector<32x32xf32>
    %171 = vector.shape_cast %170 : vector<32x32xf32> to vector<4x8x32xf32>
    %172 = vector.broadcast %5 : vector<4x1x32xf32> to vector<4x8x32xf32>
    %173 = arith.mulf %171, %172 : vector<4x8x32xf32>
    %cst_90 = arith.constant dense<0.000000e+00> : vector<8x32xf32>
    %174 = vector.multi_reduction <add>, %173, %cst_90 [0] : vector<4x8x32xf32> to vector<8x32xf32>
    %175 = arith.truncf %174 : vector<8x32xf32> to vector<8x32xbf16>
    %cst_91 = arith.constant dense<0.000000e+00> : vector<8x32xf32>
    %176 = tpu.matmul %175, %127, %cst_91 {dimension_numbers = #tpu.dot_dimension_numbers<[1], [0], [0], [1], [0, 0, 1, 1], [], []>} : vector<8x32xbf16>, vector<32x32xbf16>, vector<8x32xf32> -> vector<8x32xf32>
    %177 = vector.broadcast %129 : vector<1x32xf32> to vector<8x32xf32>
    %178 = arith.addf %176, %177 : vector<8x32xf32>
    %179 = arith.addf %178, %121 : vector<8x32xf32>
    %cst_92 = arith.constant dense<0.000000e+00> : vector<8xf32>
    %180 = vector.multi_reduction <add>, %179, %cst_92 [1] : vector<8x32xf32> to vector<8xf32>
    %181 = vector.shape_cast %180 : vector<8xf32> to vector<8x1xf32>
    %cst_93 = arith.constant 3.200000e+01 : f32
    %182 = vector.broadcast %cst_93 : f32 to vector<8x1xf32>
    %183 = arith.divf %181, %182 : vector<8x1xf32>
    %184 = arith.mulf %179, %179 : vector<8x32xf32>
    %cst_94 = arith.constant dense<0.000000e+00> : vector<8xf32>
    %185 = vector.multi_reduction <add>, %184, %cst_94 [1] : vector<8x32xf32> to vector<8xf32>
    %186 = vector.shape_cast %185 : vector<8xf32> to vector<8x1xf32>
    %cst_95 = arith.constant 3.200000e+01 : f32
    %187 = vector.broadcast %cst_95 : f32 to vector<8x1xf32>
    %188 = arith.divf %186, %187 : vector<8x1xf32>
    %189 = arith.mulf %183, %183 : vector<8x1xf32>
    %190 = arith.subf %188, %189 : vector<8x1xf32>
    %191 = vector.broadcast %183 : vector<8x1xf32> to vector<8x32xf32>
    %192 = arith.subf %179, %191 : vector<8x32xf32>
    %cst_96 = arith.constant 9.99999974E-6 : f32
    %193 = vector.broadcast %cst_96 : f32 to vector<8x1xf32>
    %194 = arith.addf %190, %193 : vector<8x1xf32>
    %195 = math.rsqrt %194 : vector<8x1xf32>
    %196 = vector.broadcast %195 : vector<8x1xf32> to vector<8x32xf32>
    %197 = arith.mulf %192, %196 : vector<8x32xf32>
    %198 = vector.broadcast %131 : vector<1x32xf32> to vector<8x32xf32>
    %199 = arith.mulf %197, %198 : vector<8x32xf32>
    %200 = vector.broadcast %133 : vector<1x32xf32> to vector<8x32xf32>
    %201 = arith.addf %199, %200 : vector<8x32xf32>
    %202 = arith.truncf %201 : vector<8x32xf32> to vector<8x32xbf16>
    %cst_97 = arith.constant dense<0.000000e+00> : vector<8x64xf32>
    %203 = tpu.matmul %202, %135, %cst_97 {dimension_numbers = #tpu.dot_dimension_numbers<[1], [0], [0], [1], [0, 0, 1, 1], [], []>} : vector<8x32xbf16>, vector<32x64xbf16>, vector<8x64xf32> -> vector<8x64xf32>
    %204 = vector.broadcast %137 : vector<1x64xf32> to vector<8x64xf32>
    %205 = arith.addf %203, %204 : vector<8x64xf32>
    %cst_98 = arith.constant 0.000000e+00 : f32
    %206 = vector.broadcast %cst_98 : f32 to vector<8x64xf32>
    %207 = arith.maximumf %205, %206 : vector<8x64xf32>
    %208 = arith.truncf %207 : vector<8x64xf32> to vector<8x64xbf16>
    %cst_99 = arith.constant dense<0.000000e+00> : vector<8x32xf32>
    %209 = tpu.matmul %208, %139, %cst_99 {dimension_numbers = #tpu.dot_dimension_numbers<[1], [0], [0], [1], [0, 0, 1, 1], [], []>} : vector<8x64xbf16>, vector<64x32xbf16>, vector<8x32xf32> -> vector<8x32xf32>
    %210 = vector.broadcast %141 : vector<1x32xf32> to vector<8x32xf32>
    %211 = arith.addf %209, %210 : vector<8x32xf32>
    %212 = arith.addf %211, %201 : vector<8x32xf32>
    %cst_100 = arith.constant dense<0.000000e+00> : vector<8xf32>
    %213 = vector.multi_reduction <add>, %212, %cst_100 [1] : vector<8x32xf32> to vector<8xf32>
    %214 = vector.shape_cast %213 : vector<8xf32> to vector<8x1xf32>
    %cst_101 = arith.constant 3.200000e+01 : f32
    %215 = vector.broadcast %cst_101 : f32 to vector<8x1xf32>
    %216 = arith.divf %214, %215 : vector<8x1xf32>
    %217 = arith.mulf %212, %212 : vector<8x32xf32>
    %cst_102 = arith.constant dense<0.000000e+00> : vector<8xf32>
    %218 = vector.multi_reduction <add>, %217, %cst_102 [1] : vector<8x32xf32> to vector<8xf32>
    %219 = vector.shape_cast %218 : vector<8xf32> to vector<8x1xf32>
    %cst_103 = arith.constant 3.200000e+01 : f32
    %220 = vector.broadcast %cst_103 : f32 to vector<8x1xf32>
    %221 = arith.divf %219, %220 : vector<8x1xf32>
    %222 = arith.mulf %216, %216 : vector<8x1xf32>
    %223 = arith.subf %221, %222 : vector<8x1xf32>
    %224 = vector.broadcast %216 : vector<8x1xf32> to vector<8x32xf32>
    %225 = arith.subf %212, %224 : vector<8x32xf32>
    %cst_104 = arith.constant 9.99999974E-6 : f32
    %226 = vector.broadcast %cst_104 : f32 to vector<8x1xf32>
    %227 = arith.addf %223, %226 : vector<8x1xf32>
    %228 = math.rsqrt %227 : vector<8x1xf32>
    %229 = vector.broadcast %228 : vector<8x1xf32> to vector<8x32xf32>
    %230 = arith.mulf %225, %229 : vector<8x32xf32>
    %231 = vector.broadcast %131 : vector<1x32xf32> to vector<8x32xf32>
    %232 = arith.mulf %230, %231 : vector<8x32xf32>
    %233 = vector.broadcast %133 : vector<1x32xf32> to vector<8x32xf32>
    %234 = arith.addf %232, %233 : vector<8x32xf32>
    %c0_105 = arith.constant 0 : index
    %c0_106 = arith.constant 0 : index
    %235 = vector.load %arg14[%c0_105, %c0_106] : memref<32x128xbf16, #tpu.memory_space<vmem>>, vector<32x128xbf16>
    %236 = arith.truncf %234 : vector<8x32xf32> to vector<8x32xbf16>
    %cst_107 = arith.constant dense<0.000000e+00> : vector<8x128xf32>
    %237 = tpu.matmul %236, %235, %cst_107 {dimension_numbers = #tpu.dot_dimension_numbers<[1], [0], [0], [1], [0, 0, 1, 1], [], []>} : vector<8x32xbf16>, vector<32x128xbf16>, vector<8x128xf32> -> vector<8x128xf32>
    %c0_108 = arith.constant 0 : index
    %c0_109 = arith.constant 0 : index
    %c0_110 = arith.constant 0 : index
    %238 = vector.load %arg15[%c0_108, %c0_109, %c0_110] : memref<1x8x128xf32, #tpu.memory_space<vmem>>, vector<1x8x128xf32>
    %239 = vector.shape_cast %238 : vector<1x8x128xf32> to vector<8x128xf32>
    %240 = vector.shape_cast %237 : vector<8x128xf32> to vector<1x8x128xf32>
    tpu.vector_store %arg15[%c0_108, %c0_109, %c0_110], %240 {strides = array<i32>} : memref<1x8x128xf32, #tpu.memory_space<vmem>>, vector<1x8x128xf32>,
    return
  }
  func.func @transform_0(%arg0: i32) -> (i32, i32, i32) {
    %c0_i32 = arith.constant 0 : i32
    %c0_i32_0 = arith.constant 0 : i32
    %c0_i32_1 = arith.constant 0 : i32
    return %arg0, %c0_i32, %c0_i32_0 : i32, i32, i32
  }
  func.func @transform_1(%arg0: i32) -> (i32, i32, i32) {
    %c0_i32 = arith.constant 0 : i32
    %c0_i32_0 = arith.constant 0 : i32
    %c0_i32_1 = arith.constant 0 : i32
    return %arg0, %c0_i32, %c0_i32_0 : i32, i32, i32
  }
  func.func @transform_2(%arg0: i32) -> (i32, i32) {
    %c0_i32 = arith.constant 0 : i32
    %c0_i32_0 = arith.constant 0 : i32
    %c0_i32_1 = arith.constant 0 : i32
    return %c0_i32, %c0_i32_0 : i32, i32
  }
  func.func @transform_3(%arg0: i32) -> (i32, i32, i32) {
    %c0_i32 = arith.constant 0 : i32
    %c0_i32_0 = arith.constant 0 : i32
    %c0_i32_1 = arith.constant 0 : i32
    %c0_i32_2 = arith.constant 0 : i32
    return %c0_i32, %c0_i32_0, %c0_i32_1 : i32, i32, i32
  }
  func.func @transform_4(%arg0: i32) -> (i32, i32, i32) {
    %c0_i32 = arith.constant 0 : i32
    %c0_i32_0 = arith.constant 0 : i32
    %c0_i32_1 = arith.constant 0 : i32
    %c0_i32_2 = arith.constant 0 : i32
    return %c0_i32, %c0_i32_0, %c0_i32_1 : i32, i32, i32
  }
  func.func @transform_5(%arg0: i32) -> (i32, i32, i32) {
    %c0_i32 = arith.constant 0 : i32
    %c0_i32_0 = arith.constant 0 : i32
    %c0_i32_1 = arith.constant 0 : i32
    %c0_i32_2 = arith.constant 0 : i32
    return %c0_i32, %c0_i32_0, %c0_i32_1 : i32, i32, i32
  }
  func.func @transform_6(%arg0: i32) -> (i32, i32, i32) {
    %c0_i32 = arith.constant 0 : i32
    %c0_i32_0 = arith.constant 0 : i32
    %c0_i32_1 = arith.constant 0 : i32
    %c0_i32_2 = arith.constant 0 : i32
    return %c0_i32, %c0_i32_0, %c0_i32_1 : i32, i32, i32
  }
  func.func @transform_7(%arg0: i32) -> (i32, i32, i32) {
    %c0_i32 = arith.constant 0 : i32
    %c0_i32_0 = arith.constant 0 : i32
    %c0_i32_1 = arith.constant 0 : i32
    %c0_i32_2 = arith.constant 0 : i32
    return %c0_i32, %c0_i32_0, %c0_i32_1 : i32, i32, i32
  }
  func.func @transform_8(%arg0: i32) -> (i32, i32, i32) {
    %c0_i32 = arith.constant 0 : i32
    %c0_i32_0 = arith.constant 0 : i32
    %c0_i32_1 = arith.constant 0 : i32
    %c0_i32_2 = arith.constant 0 : i32
    return %c0_i32, %c0_i32_0, %c0_i32_1 : i32, i32, i32
  }
  func.func @transform_9(%arg0: i32) -> (i32, i32, i32) {
    %c0_i32 = arith.constant 0 : i32
    %c0_i32_0 = arith.constant 0 : i32
    %c0_i32_1 = arith.constant 0 : i32
    %c0_i32_2 = arith.constant 0 : i32
    return %c0_i32, %c0_i32_0, %c0_i32_1 : i32, i32, i32
  }
  func.func @transform_10(%arg0: i32) -> (i32, i32, i32) {
    %c0_i32 = arith.constant 0 : i32
    %c0_i32_0 = arith.constant 0 : i32
    %c0_i32_1 = arith.constant 0 : i32
    %c0_i32_2 = arith.constant 0 : i32
    return %c0_i32, %c0_i32_0, %c0_i32_1 : i32, i32, i32
  }
  func.func @transform_11(%arg0: i32) -> (i32, i32, i32) {
    %c0_i32 = arith.constant 0 : i32
    %c0_i32_0 = arith.constant 0 : i32
    %c0_i32_1 = arith.constant 0 : i32
    %c0_i32_2 = arith.constant 0 : i32
    return %c0_i32, %c0_i32_0, %c0_i32_1 : i32, i32, i32
  }
  func.func @transform_12(%arg0: i32) -> (i32, i32, i32) {
    %c0_i32 = arith.constant 0 : i32
    %c0_i32_0 = arith.constant 0 : i32
    %c0_i32_1 = arith.constant 0 : i32
    %c0_i32_2 = arith.constant 0 : i32
    return %c0_i32, %c0_i32_0, %c0_i32_1 : i32, i32, i32
  }
  func.func @transform_13(%arg0: i32) -> (i32, i32) {
    %c0_i32 = arith.constant 0 : i32
    %c0_i32_0 = arith.constant 0 : i32
    %c0_i32_1 = arith.constant 0 : i32
    return %c0_i32, %c0_i32_0 : i32, i32
  }
  func.func @transform_14(%arg0: i32) -> (i32, i32, i32) {
    %c0_i32 = arith.constant 0 : i32
    %c0_i32_0 = arith.constant 0 : i32
    %c0_i32_1 = arith.constant 0 : i32
    return %arg0, %c0_i32, %c0_i32_0 : i32, i32, i32
  }
}

</mosaic_0001>

<llo_original>
// kernel: transformer_dso_encoder_forward.1
$region0: #{transformer_dso_encoder_forward.1}
  #allocation0 [shape = 'u32[]', space=smem, size = 0x4, offset = 0x4, fixed_abs, tag = 'smem constant byte address 0x4 - core index']
  #allocation1 [shape = 'u32[144,128]{1,0:T(1,128)}', space=vmem, size = 0x12000, scoped, tag = 'internal scratch']
  %s0 = inlined_call_operand.vmem [shape: f32[2,8,32], index: 0, kind: input, shape index: {}]
  %s1 = inlined_call_operand.vmem [shape: f32[2,8,8], index: 1, kind: input, shape index: {}]
  %s2 = inlined_call_operand.vmem [shape: f32[4,32], index: 2, kind: input, shape index: {}]
  %s3 = inlined_call_operand.vmem [shape: bf16[2,32,96], index: 3, kind: input, shape index: {}]
  %s4 = inlined_call_operand.vmem [shape: f32[2,1,96], index: 4, kind: input, shape index: {}]
  %s5 = inlined_call_operand.vmem [shape: bf16[2,32,32], index: 5, kind: input, shape index: {}]
  %s6 = inlined_call_operand.vmem [shape: f32[2,1,32], index: 6, kind: input, shape index: {}]
  %s7 = inlined_call_operand.vmem [shape: f32[2,1,32], index: 7, kind: input, shape index: {}]
  %s8 = inlined_call_operand.vmem [shape: f32[2,1,32], index: 8, kind: input, shape index: {}]
  %s9 = inlined_call_operand.vmem [shape: bf16[2,32,64], index: 9, kind: input, shape index: {}]
  %s10 = inlined_call_operand.vmem [shape: f32[2,1,64], index: 10, kind: input, shape index: {}]
  %s11 = inlined_call_operand.vmem [shape: bf16[2,64,32], index: 11, kind: input, shape index: {}]
  %s12 = inlined_call_operand.vmem [shape: f32[2,1,32], index: 12, kind: input, shape index: {}]
  %s13 = inlined_call_operand.vmem [shape: bf16[32,128], index: 13, kind: input, shape index: {}]
  %s14 = inlined_call_operand.vmem [shape: f32[2,8,128], index: 14, kind: output, shape index: {}]
  %s15 = sld [smem:[#allocation0]]
  $region89: #{transformer_dso_encoder_forward.1} parent=0
    _
  %s17 = ssub.s32 1, %s15
  %s18 = scalar_select 0, %s17, %s15
  loop: start=0, step=1, limit=4
  $region2: #{transformer_dso_encoder_forward.1} parent=0 // loop_pre_header
    _
  $region3: #{transformer_dso_encoder_forward.1} parent=0 // loop_header
    %s20 = sphi 0, %s24
    %p21 = scmp.ge.s32.totalorder %s20, 4
    %s30 = sphi 0, %s32
    %s33 = sphi 0, %s30
    %s34 = sphi 0, %s33
    %s50 = sphi 0, %s34
    %s56 = sphi 0, %s58
    %s59 = sphi 0, %s56
    %s60 = sphi 0, %s59
    %s76 = sphi 0, %s60
    %s80 = sphi 0, %s80
    %s82 = sphi 0, %s80
    %s83 = sphi 0, %s82
    %s97 = sphi 0, %s83
    %s101 = sphi 0, %s101
    %s103 = sphi 0, %s101
    %s104 = sphi 0, %s103
    %s118 = sphi 0, %s104
    %s122 = sphi 0, %s122
    %s124 = sphi 0, %s122
    %s125 = sphi 0, %s124
    %s139 = sphi 0, %s125
    %s143 = sphi 0, %s143
    %s145 = sphi 0, %s143
    %s146 = sphi 0, %s145
    %s160 = sphi 0, %s146
    %s164 = sphi 0, %s164
    %s166 = sphi 0, %s164
    %s167 = sphi 0, %s166
    %s181 = sphi 0, %s167
    %s185 = sphi 0, %s185
    %s187 = sphi 0, %s185
    %s188 = sphi 0, %s187
    %s202 = sphi 0, %s188
    %s206 = sphi 0, %s206
    %s208 = sphi 0, %s206
    %s209 = sphi 0, %s208
    %s223 = sphi 0, %s209
    %s227 = sphi 0, %s227
    %s229 = sphi 0, %s227
    %s230 = sphi 0, %s229
    %s244 = sphi 0, %s230
    %s248 = sphi 0, %s248
    %s250 = sphi 0, %s248
    %s251 = sphi 0, %s250
    %s265 = sphi 0, %s251
    %s269 = sphi 0, %s269
    %s271 = sphi 0, %s269
    %s272 = sphi 0, %s271
    %s286 = sphi 0, %s272
    %s290 = sphi 0, %s290
    %s292 = sphi 0, %s290
    %s293 = sphi 0, %s292
    %s307 = sphi 0, %s293
    %s311 = sphi 0, %s311
    %s313 = sphi 0, %s311
    %s314 = sphi 0, %s313
    %s328 = sphi 0, %s314
    %s334 = sphi 0, %s336
    %s337 = sphi 0, %s334
    %s338 = sphi 0, %s337
    %s354 = sphi 0, %s338
  $region4: #{transformer_dso_encoder_forward.1} parent=0 // loop_header_branch
    %23 = sbr.rel (%p21) target = $region8
  $region5: #{transformer_dso_encoder_forward.1} parent=0 // loop_body
    %s25 = ssub.s32 %s20, 1
    %s26 = ssub.s32 %s20, 2
    %s27 = sadd.s32 %s20, 1
    %s28 = ssub.s32 %s20, %s27
    %p29 = scmp.eq.s32.totalorder %s28, 0
    %s31 = sadd.s32 %s30, 1
    %s32 = scalar_select %p29, %s30, %s31
    %p35 = pneg %p29
    %p36 = scmp.eq.s32.totalorder %s20, 1
    %p37 = por %p35, %p36
    %p38 = scmp.ne.s32.totalorder %s30, %s33
    %p39 = scmp.eq.s32.totalorder %s20, 0
    %p40 = por %p38, %p39
    %p41 = scmp.ne.s32.totalorder %s30, %s33
    %p42 = scmp.eq.s32.totalorder %s25, 1
    %p43 = por %p41, %p42
    %p44 = scmp.ne.s32.totalorder %s33, %s34
    %p45 = scmp.eq.s32.totalorder %s25, 0
    %p46 = por %p44, %p45
    %p47 = scmp.ne.s32.totalorder %s33, %s34
    %p48 = scmp.eq.s32.totalorder %s26, 1
    %p49 = por %p47, %p48
    %p51 = scmp.ne.s32.totalorder %s34, %s50
    %p52 = scmp.eq.s32.totalorder %s26, 0
    %p53 = por %p51, %p52
    %s54 = ssub.s32 %s20, %s27
    %p55 = scmp.eq.s32.totalorder %s54, 0
    %s57 = sadd.s32 %s56, 1
    %s58 = scalar_select %p55, %s56, %s57
    %p61 = pneg %p55
    %p62 = scmp.eq.s32.totalorder %s20, 1
    %p63 = por %p61, %p62
    %p64 = scmp.ne.s32.totalorder %s56, %s59
    %p65 = scmp.eq.s32.totalorder %s20, 0
    %p66 = por %p64, %p65
    %p67 = scmp.ne.s32.totalorder %s56, %s59
    %p68 = scmp.eq.s32.totalorder %s25, 1
    %p69 = por %p67, %p68
    %p70 = scmp.ne.s32.totalorder %s59, %s60
    %p71 = scmp.eq.s32.totalorder %s25, 0
    %p72 = por %p70, %p71
    %p73 = scmp.ne.s32.totalorder %s59, %s60
    %p74 = scmp.eq.s32.totalorder %s26, 1
    %p75 = por %p73, %p74
    %p77 = scmp.ne.s32.totalorder %s60, %s76
    %p78 = scmp.eq.s32.totalorder %s26, 0
    %p79 = por %p77, %p78
    %s81 = sadd.s32 %s80, 1
    %p84 = scmp.eq.s32.totalorder %s20, 1
    %p85 = scmp.ne.s32.totalorder %s80, %s82
    %p86 = scmp.eq.s32.totalorder %s20, 0
    %p87 = por %p85, %p86
    %p88 = scmp.ne.s32.totalorder %s80, %s82
    %p89 = scmp.eq.s32.totalorder %s25, 1
    %p90 = por %p88, %p89
    %p91 = scmp.ne.s32.totalorder %s82, %s83
    %p92 = scmp.eq.s32.totalorder %s25, 0
    %p93 = por %p91, %p92
    %p94 = scmp.ne.s32.totalorder %s82, %s83
    %p95 = scmp.eq.s32.totalorder %s26, 1
    %p96 = por %p94, %p95
    %p98 = scmp.ne.s32.totalorder %s83, %s97
    %p99 = scmp.eq.s32.totalorder %s26, 0
    %p100 = por %p98, %p99
    %s102 = sadd.s32 %s101, 1
    %p105 = scmp.eq.s32.totalorder %s20, 1
    %p106 = scmp.ne.s32.totalorder %s101, %s103
    %p107 = scmp.eq.s32.totalorder %s20, 0
    %p108 = por %p106, %p107
    %p109 = scmp.ne.s32.totalorder %s101, %s103
    %p110 = scmp.eq.s32.totalorder %s25, 1
    %p111 = por %p109, %p110
    %p112 = scmp.ne.s32.totalorder %s103, %s104
    %p113 = scmp.eq.s32.totalorder %s25, 0
    %p114 = por %p112, %p113
    %p115 = scmp.ne.s32.totalorder %s103, %s104
    %p116 = scmp.eq.s32.totalorder %s26, 1
    %p117 = por %p115, %p116
    %p119 = scmp.ne.s32.totalorder %s104, %s118
    %p120 = scmp.eq.s32.totalorder %s26, 0
    %p121 = por %p119, %p120
    %s123 = sadd.s32 %s122, 1
    %p126 = scmp.eq.s32.totalorder %s20, 1
    %p127 = scmp.ne.s32.totalorder %s122, %s124
    %p128 = scmp.eq.s32.totalorder %s20, 0
    %p129 = por %p127, %p128
    %p130 = scmp.ne.s32.totalorder %s122, %s124
    %p131 = scmp.eq.s32.totalorder %s25, 1
    %p132 = por %p130, %p131
    %p133 = scmp.ne.s32.totalorder %s124, %s125
    %p134 = scmp.eq.s32.totalorder %s25, 0
    %p135 = por %p133, %p134
    %p136 = scmp.ne.s32.totalorder %s124, %s125
    %p137 = scmp.eq.s32.totalorder %s26, 1
    %p138 = por %p136, %p137
    %p140 = scmp.ne.s32.totalorder %s125, %s139
    %p141 = scmp.eq.s32.totalorder %s26, 0
    %p142 = por %p140, %p141
    %s144 = sadd.s32 %s143, 1
    %p147 = scmp.eq.s32.totalorder %s20, 1
    %p148 = scmp.ne.s32.totalorder %s143, %s145
    %p149 = scmp.eq.s32.totalorder %s20, 0
    %p150 = por %p148, %p149
    %p151 = scmp.ne.s32.totalorder %s143, %s145
    %p152 = scmp.eq.s32.totalorder %s25, 1
    %p153 = por %p151, %p152
    %p154 = scmp.ne.s32.totalorder %s145, %s146
    %p155 = scmp.eq.s32.totalorder %s25, 0
    %p156 = por %p154, %p155
    %p157 = scmp.ne.s32.totalorder %s145, %s146
    %p158 = scmp.eq.s32.totalorder %s26, 1
    %p159 = por %p157, %p158
    %p161 = scmp.ne.s32.totalorder %s146, %s160
    %p162 = scmp.eq.s32.totalorder %s26, 0
    %p163 = por %p161, %p162
    %s165 = sadd.s32 %s164, 1
    %p168 = scmp.eq.s32.totalorder %s20, 1
    %p169 = scmp.ne.s32.totalorder %s164, %s166
    %p170 = scmp.eq.s32.totalorder %s20, 0
    %p171 = por %p169, %p170
    %p172 = scmp.ne.s32.totalorder %s164, %s166
    %p173 = scmp.eq.s32.totalorder %s25, 1
    %p174 = por %p172, %p173
    %p175 = scmp.ne.s32.totalorder %s166, %s167
    %p176 = scmp.eq.s32.totalorder %s25, 0
    %p177 = por %p175, %p176
    %p178 = scmp.ne.s32.totalorder %s166, %s167
    %p179 = scmp.eq.s32.totalorder %s26, 1
    %p180 = por %p178, %p179
    %p182 = scmp.ne.s32.totalorder %s167, %s181
    %p183 = scmp.eq.s32.totalorder %s26, 0
    %p184 = por %p182, %p183
    %s186 = sadd.s32 %s185, 1
    %p189 = scmp.eq.s32.totalorder %s20, 1
    %p190 = scmp.ne.s32.totalorder %s185, %s187
    %p191 = scmp.eq.s32.totalorder %s20, 0
    %p192 = por %p190, %p191
    %p193 = scmp.ne.s32.totalorder %s185, %s187
    %p194 = scmp.eq.s32.totalorder %s25, 1
    %p195 = por %p193, %p194
    %p196 = scmp.ne.s32.totalorder %s187, %s188
    %p197 = scmp.eq.s32.totalorder %s25, 0
    %p198 = por %p196, %p197
    %p199 = scmp.ne.s32.totalorder %s187, %s188
    %p200 = scmp.eq.s32.totalorder %s26, 1
    %p201 = por %p199, %p200
    %p203 = scmp.ne.s32.totalorder %s188, %s202
    %p204 = scmp.eq.s32.totalorder %s26, 0
    %p205 = por %p203, %p204
    %s207 = sadd.s32 %s206, 1
    %p210 = scmp.eq.s32.totalorder %s20, 1
    %p211 = scmp.ne.s32.totalorder %s206, %s208
    %p212 = scmp.eq.s32.totalorder %s20, 0
    %p213 = por %p211, %p212
    %p214 = scmp.ne.s32.totalorder %s206, %s208
    %p215 = scmp.eq.s32.totalorder %s25, 1
    %p216 = por %p214, %p215
    %p217 = scmp.ne.s32.totalorder %s208, %s209
    %p218 = scmp.eq.s32.totalorder %s25, 0
    %p219 = por %p217, %p218
    %p220 = scmp.ne.s32.totalorder %s208, %s209
    %p221 = scmp.eq.s32.totalorder %s26, 1
    %p222 = por %p220, %p221
    %p224 = scmp.ne.s32.totalorder %s209, %s223
    %p225 = scmp.eq.s32.totalorder %s26, 0
    %p226 = por %p224, %p225
    %s228 = sadd.s32 %s227, 1
    %p231 = scmp.eq.s32.totalorder %s20, 1
    %p232 = scmp.ne.s32.totalorder %s227, %s229
    %p233 = scmp.eq.s32.totalorder %s20, 0
    %p234 = por %p232, %p233
    %p235 = scmp.ne.s32.totalorder %s227, %s229
    %p236 = scmp.eq.s32.totalorder %s25, 1
    %p237 = por %p235, %p236
    %p238 = scmp.ne.s32.totalorder %s229, %s230
    %p239 = scmp.eq.s32.totalorder %s25, 0
    %p240 = por %p238, %p239
    %p241 = scmp.ne.s32.totalorder %s229, %s230
    %p242 = scmp.eq.s32.totalorder %s26, 1
    %p243 = por %p241, %p242
    %p245 = scmp.ne.s32.totalorder %s230, %s244
    %p246 = scmp.eq.s32.totalorder %s26, 0
    %p247 = por %p245, %p246
    %s249 = sadd.s32 %s248, 1
    %p252 = scmp.eq.s32.totalorder %s20, 1
    %p253 = scmp.ne.s32.totalorder %s248, %s250
    %p254 = scmp.eq.s32.totalorder %s20, 0
    %p255 = por %p253, %p254
    %p256 = scmp.ne.s32.totalorder %s248, %s250
    %p257 = scmp.eq.s32.totalorder %s25, 1
    %p258 = por %p256, %p257
    %p259 = scmp.ne.s32.totalorder %s250, %s251
    %p260 = scmp.eq.s32.totalorder %s25, 0
    %p261 = por %p259, %p260
    %p262 = scmp.ne.s32.totalorder %s250, %s251
    %p263 = scmp.eq.s32.totalorder %s26, 1
    %p264 = por %p262, %p263
    %p266 = scmp.ne.s32.totalorder %s251, %s265
    %p267 = scmp.eq.s32.totalorder %s26, 0
    %p268 = por %p266, %p267
    %s270 = sadd.s32 %s269, 1
    %p273 = scmp.eq.s32.totalorder %s20, 1
    %p274 = scmp.ne.s32.totalorder %s269, %s271
    %p275 = scmp.eq.s32.totalorder %s20, 0
    %p276 = por %p274, %p275
    %p277 = scmp.ne.s32.totalorder %s269, %s271
    %p278 = scmp.eq.s32.totalorder %s25, 1
    %p279 = por %p277, %p278
    %p280 = scmp.ne.s32.totalorder %s271, %s272
    %p281 = scmp.eq.s32.totalorder %s25, 0
    %p282 = por %p280, %p281
    %p283 = scmp.ne.s32.totalorder %s271, %s272
    %p284 = scmp.eq.s32.totalorder %s26, 1
    %p285 = por %p283, %p284
    %p287 = scmp.ne.s32.totalorder %s272, %s286
    %p288 = scmp.eq.s32.totalorder %s26, 0
    %p289 = por %p287, %p288
    %s291 = sadd.s32 %s290, 1
    %p294 = scmp.eq.s32.totalorder %s20, 1
    %p295 = scmp.ne.s32.totalorder %s290, %s292
    %p296 = scmp.eq.s32.totalorder %s20, 0
    %p297 = por %p295, %p296
    %p298 = scmp.ne.s32.totalorder %s290, %s292
    %p299 = scmp.eq.s32.totalorder %s25, 1
    %p300 = por %p298, %p299
    %p301 = scmp.ne.s32.totalorder %s292, %s293
    %p302 = scmp.eq.s32.totalorder %s25, 0
    %p303 = por %p301, %p302
    %p304 = scmp.ne.s32.totalorder %s292, %s293
    %p305 = scmp.eq.s32.totalorder %s26, 1
    %p306 = por %p304, %p305
    %p308 = scmp.ne.s32.totalorder %s293, %s307
    %p309 = scmp.eq.s32.totalorder %s26, 0
    %p310 = por %p308, %p309
    %s312 = sadd.s32 %s311, 1
    %p315 = scmp.eq.s32.totalorder %s20, 1
    %p316 = scmp.ne.s32.totalorder %s311, %s313
    %p317 = scmp.eq.s32.totalorder %s20, 0
    %p318 = por %p316, %p317
    %p319 = scmp.ne.s32.totalorder %s311, %s313
    %p320 = scmp.eq.s32.totalorder %s25, 1
    %p321 = por %p319, %p320
    %p322 = scmp.ne.s32.totalorder %s313, %s314
    %p323 = scmp.eq.s32.totalorder %s25, 0
    %p324 = por %p322, %p323
    %p325 = scmp.ne.s32.totalorder %s313, %s314
    %p326 = scmp.eq.s32.totalorder %s26, 1
    %p327 = por %p325, %p326
    %p329 = scmp.ne.s32.totalorder %s314, %s328
    %p330 = scmp.eq.s32.totalorder %s26, 0
    %p331 = por %p329, %p330
    %s332 = ssub.s32 %s20, %s27
    %p333 = scmp.eq.s32.totalorder %s332, 0
    %s335 = sadd.s32 %s334, 1
    %s336 = scalar_select %p333, %s334, %s335
    %p339 = pneg %p333
    %p340 = scmp.eq.s32.totalorder %s20, 1
    %p341 = por %p339, %p340
    %p342 = scmp.ne.s32.totalorder %s334, %s337
    %p343 = scmp.eq.s32.totalorder %s20, 0
    %p344 = por %p342, %p343
    %p345 = scmp.ne.s32.totalorder %s334, %s337
    %p346 = scmp.eq.s32.totalorder %s25, 1
    %p347 = por %p345, %p346
    %p348 = scmp.ne.s32.totalorder %s337, %s338
    %p349 = scmp.eq.s32.totalorder %s25, 0
    %p350 = por %p348, %p349
    %p351 = scmp.ne.s32.totalorder %s337, %s338
    %p352 = scmp.eq.s32.totalorder %s26, 1
    %p353 = por %p351, %p352
    %p355 = scmp.ne.s32.totalorder %s338, %s354
    %p356 = scmp.eq.s32.totalorder %s26, 0
    %p357 = por %p355, %p356
    %p358 = scmp.le.s32.totalorder 1, %s20
    %p359 = scmp.lt.s32.totalorder %s20, 3
    %p360 = pnand %p358, %p359
    %p361 = pneg %p360
    // Predicated region
    $region9: #{transformer_dso_encoder_forward.1} parent=5 // pred_check
      _
    $region10: #{transformer_dso_encoder_forward.1} parent=5 // pred_check_branch
      %363 = sbr.rel (%p360) target = $region12
    $region11: #{transformer_dso_encoder_forward.1} parent=5 // pred_region
      %s364 = ssub.s32 %s20, 1
      // Predicated region
      $region13: #{transformer_dso_encoder_forward.1} parent=11 // pred_check
        %p365 = pneg %p93
      $region14: #{transformer_dso_encoder_forward.1} parent=11 // pred_check_branch
        %367 = sbr.rel (%p365) target = $region16
      $region15: #{transformer_dso_encoder_forward.1} parent=11 // pred_region
        _
      $region16: #{transformer_dso_encoder_forward.1} parent=11 // pred_fallthru
        _
      // Predicated region
      $region17: #{transformer_dso_encoder_forward.1} parent=11 // pred_check
        %p368 = pneg %p114
      $region18: #{transformer_dso_encoder_forward.1} parent=11 // pred_check_branch
        %370 = sbr.rel (%p368) target = $region20
      $region19: #{transformer_dso_encoder_forward.1} parent=11 // pred_region
        _
      $region20: #{transformer_dso_encoder_forward.1} parent=11 // pred_fallthru
        _
      // Predicated region
      $region21: #{transformer_dso_encoder_forward.1} parent=11 // pred_check
        %p371 = pneg %p135
      $region22: #{transformer_dso_encoder_forward.1} parent=11 // pred_check_branch
        %373 = sbr.rel (%p371) target = $region24
      $region23: #{transformer_dso_encoder_forward.1} parent=11 // pred_region
        _
      $region24: #{transformer_dso_encoder_forward.1} parent=11 // pred_fallthru
        _
      // Predicated region
      $region25: #{transformer_dso_encoder_forward.1} parent=11 // pred_check
        %p374 = pneg %p156
      $region26: #{transformer_dso_encoder_forward.1} parent=11 // pred_check_branch
        %376 = sbr.rel (%p374) target = $region28
      $region27: #{transformer_dso_encoder_forward.1} parent=11 // pred_region
        _
      $region28: #{transformer_dso_encoder_forward.1} parent=11 // pred_fallthru
        _
      // Predicated region
      $region29: #{transformer_dso_encoder_forward.1} parent=11 // pred_check
        %p377 = pneg %p177
      $region30: #{transformer_dso_encoder_forward.1} parent=11 // pred_check_branch
        %379 = sbr.rel (%p377) target = $region32
      $region31: #{transformer_dso_encoder_forward.1} parent=11 // pred_region
        _
      $region32: #{transformer_dso_encoder_forward.1} parent=11 // pred_fallthru
        _
      // Predicated region
      $region33: #{transformer_dso_encoder_forward.1} parent=11 // pred_check
        %p380 = pneg %p198
      $region34: #{transformer_dso_encoder_forward.1} parent=11 // pred_check_branch
        %382 = sbr.rel (%p380) target = $region36
      $region35: #{transformer_dso_encoder_forward.1} parent=11 // pred_region
        _
      $region36: #{transformer_dso_encoder_forward.1} parent=11 // pred_fallthru
        _
      // Predicated region
      $region37: #{transformer_dso_encoder_forward.1} parent=11 // pred_check
        %p383 = pneg %p219
      $region38: #{transformer_dso_encoder_forward.1} parent=11 // pred_check_branch
        %385 = sbr.rel (%p383) target = $region40
      $region39: #{transformer_dso_encoder_forward.1} parent=11 // pred_region
        _
      $region40: #{transformer_dso_encoder_forward.1} parent=11 // pred_fallthru
        _
      // Predicated region
      $region41: #{transformer_dso_encoder_forward.1} parent=11 // pred_check
        %p386 = pneg %p240
      $region42: #{transformer_dso_encoder_forward.1} parent=11 // pred_check_branch
        %388 = sbr.rel (%p386) target = $region44
      $region43: #{transformer_dso_encoder_forward.1} parent=11 // pred_region
        _
      $region44: #{transformer_dso_encoder_forward.1} parent=11 // pred_fallthru
        _
      // Predicated region
      $region45: #{transformer_dso_encoder_forward.1} parent=11 // pred_check
        %p389 = pneg %p261
      $region46: #{transformer_dso_encoder_forward.1} parent=11 // pred_check_branch
        %391 = sbr.rel (%p389) target = $region48
      $region47: #{transformer_dso_encoder_forward.1} parent=11 // pred_region
        _
      $region48: #{transformer_dso_encoder_forward.1} parent=11 // pred_fallthru
        _
      // Predicated region
      $region49: #{transformer_dso_encoder_forward.1} parent=11 // pred_check
        %p392 = pneg %p282
      $region50: #{transformer_dso_encoder_forward.1} parent=11 // pred_check_branch
        %394 = sbr.rel (%p392) target = $region52
      $region51: #{transformer_dso_encoder_forward.1} parent=11 // pred_region
        _
      $region52: #{transformer_dso_encoder_forward.1} parent=11 // pred_fallthru
        _
      // Predicated region
      $region53: #{transformer_dso_encoder_forward.1} parent=11 // pred_check
        %p395 = pneg %p303
      $region54: #{transformer_dso_encoder_forward.1} parent=11 // pred_check_branch
        %397 = sbr.rel (%p395) target = $region56
      $region55: #{transformer_dso_encoder_forward.1} parent=11 // pred_region
        _
      $region56: #{transformer_dso_encoder_forward.1} parent=11 // pred_fallthru
        _
      // Predicated region
      $region57: #{transformer_dso_encoder_forward.1} parent=11 // pred_check
        %p398 = pneg %p324
      $region58: #{transformer_dso_encoder_forward.1} parent=11 // pred_check_branch
        %400 = sbr.rel (%p398) target = $region60
      $region59: #{transformer_dso_encoder_forward.1} parent=11 // pred_region
        _
      $region60: #{transformer_dso_encoder_forward.1} parent=11 // pred_fallthru
        _
    $region12: #{transformer_dso_encoder_forward.1} parent=5 // pred_fallthru
      _
    %p401 = scmp.lt.s32.totalorder %s20, 2
    // Predicated region
    $region61: #{transformer_dso_encoder_forward.1} parent=5 // pred_check
      %p402 = pneg %p401
    $region62: #{transformer_dso_encoder_forward.1} parent=5 // pred_check_branch
      %404 = sbr.rel (%p402) target = $region64
    $region63: #{transformer_dso_encoder_forward.1} parent=5 // pred_region
      // Predicated region
      $region65: #{transformer_dso_encoder_forward.1} parent=63 // pred_check
        %p405 = pneg %p40
      $region66: #{transformer_dso_encoder_forward.1} parent=63 // pred_check_branch
        %407 = sbr.rel (%p405) target = $region68
      $region67: #{transformer_dso_encoder_forward.1} parent=63 // pred_region
        %p408 = scmp.lt.s32.totalorder %s20, 1
        %s409 = scalar_select %p408, %s20, 1
        %s410 = smul.addr %s409, 8
        %s411 = scalar_lea.vmem %s0, %s410
      $region68: #{transformer_dso_encoder_forward.1} parent=63 // pred_fallthru
        _
      // Predicated region
      $region69: #{transformer_dso_encoder_forward.1} parent=63 // pred_check
        %p412 = pneg %p66
      $region70: #{transformer_dso_encoder_forward.1} parent=63 // pred_check_branch
        %414 = sbr.rel (%p412) target = $region72
      $region71: #{transformer_dso_encoder_forward.1} parent=63 // pred_region
        %p415 = scmp.lt.s32.totalorder %s20, 1
        %s416 = scalar_select %p415, %s20, 1
        %s417 = smul.addr %s416, 8
        %s418 = scalar_lea.vmem %s1, %s417
      $region72: #{transformer_dso_encoder_forward.1} parent=63 // pred_fallthru
        _
    $region64: #{transformer_dso_encoder_forward.1} parent=5 // pred_fallthru
      _
    %p419 = scmp.le.s32.totalorder 1, %s20
    %p420 = scmp.lt.s32.totalorder %s20, 3
    %p421 = pnand %p419, %p420
    %p422 = pneg %p421
    // Predicated region
    $region73: #{transformer_dso_encoder_forward.1} parent=5 // pred_check
      _
    $region74: #{transformer_dso_encoder_forward.1} parent=5 // pred_check_branch
      %424 = sbr.rel (%p421) target = $region76
    $region75: #{transformer_dso_encoder_forward.1} parent=5 // pred_region
      %s425 = ssub.s32 %s20, 1
      %p426 = scmp.lt.s32.totalorder %s25, 1
      %s427 = scalar_select %p426, %s25, 1
      %s428 = smul.addr %s427, 8
      %s429 = scalar_lea.vmem %s0, %s428
      %p430 = pneg %p46
      %p431 = pneg %p43
      %p432 = scmp.lt.s32.totalorder %s25, 1
      %s433 = scalar_select %p432, %s25, 1
      %s434 = smul.addr %s433, 8
      %s435 = scalar_lea.vmem %s1, %s434
      %p436 = pneg %p72
      %p437 = pneg %p69
      %p438 = pneg %p93
      %p439 = pneg %p90
      %p440 = pneg %p114
      %p441 = pneg %p111
      %p442 = pneg %p135
      %p443 = pneg %p132
      %p444 = pneg %p156
      %p445 = pneg %p153
      %p446 = pneg %p177
      %p447 = pneg %p174
      %p448 = pneg %p198
      %p449 = pneg %p195
      %p450 = pneg %p219
      %p451 = pneg %p216
      %p452 = pneg %p240
      %p453 = pneg %p237
      %p454 = pneg %p261
      %p455 = pneg %p258
      %p456 = pneg %p282
      %p457 = pneg %p279
      %p458 = pneg %p303
      %p459 = pneg %p300
      %p460 = pneg %p324
      %p461 = pneg %p321
      %p462 = pneg %p350
      %p463 = pneg %p347
      %p464 = scmp.lt.s32.totalorder %s25, 1
      %s465 = scalar_select %p464, %s25, 1
      %s466 = smul.addr %s465, 8
      %s467 = scalar_lea.vmem %s14, %s466
      %p468 = scmp.lt.s32.totalorder %s25, 1
      %s469 = scalar_select %p468, %s25, 1
      %s470 = smul.addr %s469, 8
      %s471 = scalar_lea.vmem %s0, %s470
      %p472 = scmp.lt.s32.totalorder %s25, 1
      %s473 = scalar_select %p472, %s25, 1
      %s474 = smul.addr %s473, 8
      %s475 = scalar_lea.vmem %s1, %s474
      %p476 = scmp.lt.s32.totalorder %s25, 1
      %s477 = scalar_select %p476, %s25, 1
      %s478 = smul.addr %s477, 8
      %s479 = scalar_lea.vmem %s14, %s478
      %v481 = vld [vmem:[%s471] sm:$0xff]
      %v482 = vld [vmem:[%s475] sm:$0xff]
      %v483 = vld [vmem:[%s2] sm:$0xf]
      %v486 = vunpack.c.l.s4 1966171168
      %v487 = vunpack.c.0.s8 %v486
      %v488 = vlaneseq
      %v489 = vshrl.u32 %v488, 7
      %v490 = vsub.s32 %v487, %v489
      %v491 = vrot.slane %v483, %v490
      %v492 = vcombine.high %v491, %v491
      %v494 = vunpack.c.l.s4 1966171168
      %v495 = vunpack.c.0.s8 %v494
      %v496 = vlaneseq
      %v497 = vshrl.u32 %v496, 7
      %v498 = vsub.s32 %v495, %v497
      %v499 = vrot.slane %v491, %v498
      %v501 = vunpack.c.l.s4 1966171168
      %v502 = vunpack.c.0.s8 %v501
      %v503 = vlaneseq
      %v504 = vshrl.u32 %v503, 7
      %v505 = vsub.s32 %v502, %v504
      %v506 = vrot.slane %v492, %v505
      %v507 = vcombine.high %v499, %v499
      %v508 = vcombine.high %v506, %v506
      %v509 = vld [vmem:[%s3] sm:$0xf]
      %v510 = vld [vmem:[%s3 + $0x4] sm:$0xf]
      %v511 = vld [vmem:[%s3 + $0x8] sm:$0xf]
      %v512 = vld [vmem:[%s3 + $0xc] sm:$0xf]
      %v513 = vld [vmem:[%s4] sm:$0x1]
      %v514 = vld [vmem:[%s5] sm:$0xf]
      %v515 = vld [vmem:[%s5 + $0x4] sm:$0xf]
      %v516 = vld [vmem:[%s5 + $0x8] sm:$0xf]
      %v517 = vld [vmem:[%s5 + $0xc] sm:$0xf]
      %v518 = vld [vmem:[%s6] sm:$0x1]
      %v519 = vld [vmem:[%s7] sm:$0x1]
      %v520 = vld [vmem:[%s8] sm:$0x1]
      %v521 = vld [vmem:[%s9] sm:$0xf]
      %v522 = vld [vmem:[%s9 + $0x4] sm:$0xf]
      %v523 = vld [vmem:[%s9 + $0x8] sm:$0xf]
      %v524 = vld [vmem:[%s9 + $0xc] sm:$0xf]
      %v525 = vld [vmem:[%s10] sm:$0x1]
      %v526 = vld [vmem:[%s11] sm:$0xf]
      %v527 = vld [vmem:[%s11 + $0x4] sm:$0xf]
      %v528 = vld [vmem:[%s11 + $0x8] sm:$0xf]
      %v529 = vld [vmem:[%s11 + $0xc] sm:$0xf]
      %v530 = vld [vmem:[%s11 + $0x10] sm:$0xf]
      %v531 = vld [vmem:[%s11 + $0x14] sm:$0xf]
      %v532 = vld [vmem:[%s11 + $0x18] sm:$0xf]
      %v533 = vld [vmem:[%s11 + $0x1c] sm:$0xf]
      %v534 = vld [vmem:[%s12] sm:$0x1]
      %v535 = vpack.c.bf16 %v481, %v481
      %v537 = vlaneseq
      %v538 = vshrl.u32 %v537, 7
      %v539 = vsub.s32 0, %v538
      %v540 = vrot.slane %v513, %v539
      %v546 = vunpack.c.l.b16 %v509
      %v547 = vunpack.c.l.b16 %v510
      %v548 = vunpack.c.l.b16 %v511
      %v549 = vunpack.c.l.b16 %v512
      %v550 = vpack.c.b16 %v547, %v546
      %v551 = vpack.c.b16 %v549, %v548
      %vm554 = vcmask 261120
      %v556 = vsel %vm554, %v535, 0
      %558 = vmatprep.subr.bf16.mxu0 0
      %559 = vmatpush1.bf16.msra.mxu0 0
      %560 = vmatprep.subr.bf16.mxu0 0
      %561 = vmatpush1.bf16.msra.mxu0 0
      %562 = vmatprep.subr.bf16.mxu0 0
      %563 = vmatpush1.bf16.msra.mxu0 0
      %564 = vmatprep.subr.bf16.mxu0 0
      %565 = vmatpush1.bf16.msra.mxu0 0
      %566 = vmatprep.subr.bf16.mxu0 0
      %567 = vmatpush1.bf16.msra.mxu0 0
      %568 = vmatprep.subr.bf16.mxu0 0
      %569 = vmatpush1.bf16.msra.mxu0 0
      %570 = vmatprep.subr.bf16.mxu0 0
      %571 = vmatpush1.bf16.msra.mxu0 %v551
      %572 = vmatprep.subr.bf16.mxu0 0
      %573 = vmatpush1.bf16.msra.mxu0 %v550
      %574 = vmatprep.subr.bf16.mxu0 0
      %575 = vmatpush2.bf16.msra.mxu0 0
      %576 = vmatprep.subr.bf16.mxu0 0
      %577 = vmatpush2.bf16.msra.mxu0 0
      %578 = vmatprep.subr.bf16.mxu0 0
      %579 = vmatpush2.bf16.msra.mxu0 0
      %580 = vmatprep.subr.bf16.mxu0 0
      %581 = vmatpush2.bf16.msra.mxu0 0
      %582 = vmatprep.subr.bf16.mxu0 0
      %583 = vmatpush2.bf16.msra.mxu0 0
      %584 = vmatprep.subr.bf16.mxu0 0
      %585 = vmatpush2.bf16.msra.mxu0 0
      %586 = vmatprep.subr.bf16.mxu0 0
      %587 = vmatpush2.bf16.msra.mxu0 0
      %588 = vmatprep.subr.bf16.mxu0 0
      %589 = vmatpush2.bf16.msra.mxu0 0
      %590 = vmatprep.mubr.bf16.mxu0 0
      %591 = vmatmul.mubr.bf16.gmra.mxu0 %v556
      %v592 = vpop.f32.mrf.mxu0
      %v593 = vadd.f32 %v540, %v592
      %v594 = vpop.f32.mrf.mxu0
      %v595 = vpop.f32.mrf.mxu0
      %v596 = vpop.f32.mrf.mxu0
      %597 = vdwg.mxu0
      %v598 = vlaneseq
      %v599 = vshrl.u32 %v598, 7
      %v600 = vsub.s32 0, %v599
      %v601 = vrot.slane %v499, %v600
      %v602 = vlaneseq
      %v603 = vshrl.u32 %v602, 7
      %v604 = vsub.s32 0, %v603
      %v605 = vrot.slane %v506, %v604
      %v606 = vlaneseq
      %v607 = vshrl.u32 %v606, 7
      %v608 = vsub.s32 0, %v607
      %v609 = vrot.slane %v507, %v608
      %v610 = vlaneseq
      %v611 = vshrl.u32 %v610, 7
      %v612 = vsub.s32 0, %v611
      %v613 = vrot.slane %v508, %v612
      %v618 = vmul.f32 %v593, %v601
      %v619 = vmul.f32 %v593, %v605
      %v620 = vmul.f32 %v593, %v609
      %v621 = vmul.f32 %v593, %v613
      %v622 = vpack.c.bf16 %v619, %v618
      %v623 = vpack.c.bf16 %v621, %v620
      %v624 = vpack.c.bf16 %v593, %v593
      %626 = vrot.lane.b32.xlu0 %v624, 96
      %v627 = vpop.permute.xlu0 %626
      %v629 = vsel %vm554, %v622, 0
      %v632 = vsel %vm554, %v623, 0
      %v635 = vsel %vm554, %v627, 0
      %637 = vmatprep.subr.bf16.mxu0 0
      %638 = vmatpush1.bf16.xpose.msra.mxu0 0
      %639 = vmatprep.subr.bf16.mxu0 0
      %640 = vmatpush1.bf16.xpose.msra.mxu0 0
      %641 = vmatprep.subr.bf16.mxu0 0
      %642 = vmatpush1.bf16.xpose.msra.mxu0 0
      %643 = vmatprep.subr.bf16.mxu0 0
      %644 = vmatpush1.bf16.xpose.msra.mxu0 0
      %645 = vmatprep.subr.bf16.mxu0 0
      %646 = vmatpush1.bf16.xpose.msra.mxu0 0
      %647 = vmatprep.subr.bf16.mxu0 0
      %648 = vmatpush1.bf16.xpose.msra.mxu0 0
      %649 = vmatprep.subr.bf16.mxu0 0
      %650 = vmatpush1.bf16.xpose.msra.mxu0 0
      %651 = vmatprep.subr.bf16.mxu0 0
      %652 = vmatpush1.bf16.xpose.msra.mxu0 %v635
      %653 = vmatprep.subr.bf16.mxu0 0
      %654 = vmatpush2.bf16.xpose.msra.mxu0 0
      %655 = vmatprep.subr.bf16.mxu0 0
      %656 = vmatpush2.bf16.xpose.msra.mxu0 0
      %657 = vmatprep.subr.bf16.mxu0 0
      %658 = vmatpush2.bf16.xpose.msra.mxu0 0
      %659 = vmatprep.subr.bf16.mxu0 0
      %660 = vmatpush2.bf16.xpose.msra.mxu0 0
      %661 = vmatprep.subr.bf16.mxu0 0
      %662 = vmatpush2.bf16.xpose.msra.mxu0 0
      %663 = vmatprep.subr.bf16.mxu0 0
      %664 = vmatpush2.bf16.xpose.msra.mxu0 0
      %665 = vmatprep.subr.bf16.mxu0 0
      %666 = vmatpush2.bf16.xpose.msra.mxu0 0
      %667 = vmatprep.subr.bf16.mxu0 0
      %668 = vmatpush2.bf16.xpose.msra.mxu0 0
      %669 = vmatprep.mubr.bf16.mxu0 0
      %670 = vmatmul.mubr.bf16.gmra.mxu0 %v629
      %v671 = vpop.f32.mrf.mxu0
      %v672 = vadd.f32 %v482, %v671
      %v673 = vpop.f32.mrf.mxu0
      %v674 = vpop.f32.mrf.mxu0
      %v675 = vadd.f32 %v482, %v674
      %v676 = vpop.f32.mrf.mxu0
      %677 = vmatprep.mubr.bf16.mxu0 0
      %678 = vmatmul.mubr.bf16.gmra.mxu0 %v632
      %v679 = vpop.f32.mrf.mxu0
      %v680 = vadd.f32 %v482, %v679
      %v681 = vpop.f32.mrf.mxu0
      %v682 = vpop.f32.mrf.mxu0
      %v683 = vadd.f32 %v482, %v682
      %v684 = vpop.f32.mrf.mxu0
      %685 = vdwg.mxu0
      %vm686 = vcmask 64512
      %v687 = vsel %vm686, %v672, -inf
      %688 = vmax.xlane.f32.xlu0 %v687
      %v689 = vpop.xlane.xlu0 %688
      %v690 = vsel %vm686, %v675, -inf
      %691 = vmax.xlane.f32.xlu0 %v690
      %v692 = vpop.xlane.xlu0 %691
      %v693 = vsel %vm686, %v680, -inf
      %694 = vmax.xlane.f32.xlu0 %v693
      %v695 = vpop.xlane.xlu0 %694
      %v696 = vsel %vm686, %v683, -inf
      %697 = vmax.xlane.f32.xlu0 %v696
      %v698 = vpop.xlane.xlu0 %697
      %v699 = vsub.f32 %v672, %v689
      %v700 = vsub.f32 %v675, %v692
      %v701 = vsub.f32 %v680, %v695
      %v702 = vsub.f32 %v683, %v698
      %v703 = vmul.f32 %v699, 1.442695
      %v704 = vpow.pop %v703
      %v705 = vmul.f32 %v700, 1.442695
      %v706 = vpow.pop %v705
      %v707 = vmul.f32 %v701, 1.442695
      %v708 = vpow.pop %v707
      %v709 = vmul.f32 %v702, 1.442695
      %v710 = vpow.pop %v709
      %v711 = vsel %vm686, %v704, 0.0
      %712 = vadd.xlane.f32.xlu0 %v711
      %v713 = vpop.xlane.xlu0 %712
      %v714 = vsel %vm686, %v706, 0.0
      %715 = vadd.xlane.f32.xlu0 %v714
      %v716 = vpop.xlane.xlu0 %715
      %v717 = vsel %vm686, %v708, 0.0
      %718 = vadd.xlane.f32.xlu0 %v717
      %v719 = vpop.xlane.xlu0 %718
      %v720 = vsel %vm686, %v710, 0.0
      %721 = vadd.xlane.f32.xlu0 %v720
      %v722 = vpop.xlane.xlu0 %721
      %v723 = vrcp.pop %v713
      %v724 = vrcp.pop %v716
      %v725 = vrcp.pop %v719
      %v726 = vrcp.pop %v722
      %v727 = vmul.f32 %v704, %v723
      %v728 = vmul.f32 %v706, %v724
      %v729 = vmul.f32 %v708, %v725
      %v730 = vmul.f32 %v710, %v726
      %v731 = vpack.c.bf16 %v728, %v727
      %v732 = vpack.c.bf16 %v730, %v729
      %733 = vrot.lane.b32.xlu0 %v624, 64
      %v734 = vpop.permute.xlu0 %733
      %v736 = vsel %vm686, %v731, 0
      %v739 = vsel %vm686, %v732, 0
      %vm741 = vcmask 1043456
      %v743 = vsel %vm741, %v734, 0
      %745 = vmatprep.subr.bf16.mxu0 0
      %746 = vmatpush1.bf16.msra.mxu0 0
      %747 = vmatprep.subr.bf16.mxu0 0
      %748 = vmatpush1.bf16.msra.mxu0 0
      %749 = vmatprep.subr.bf16.mxu0 0
      %750 = vmatpush1.bf16.msra.mxu0 0
      %751 = vmatprep.subr.bf16.mxu0 0
      %752 = vmatpush1.bf16.msra.mxu0 0
      %753 = vmatprep.subr.bf16.mxu0 0
      %754 = vmatpush1.bf16.msra.mxu0 0
      %755 = vmatprep.subr.bf16.mxu0 0
      %756 = vmatpush1.bf16.msra.mxu0 0
      %757 = vmatprep.subr.bf16.mxu0 0
      %758 = vmatpush1.bf16.msra.mxu0 0
      %759 = vmatprep.subr.bf16.mxu0 0
      %760 = vmatpush1.bf16.msra.mxu0 %v743
      %761 = vmatprep.subr.bf16.mxu0 0
      %762 = vmatpush2.bf16.msra.mxu0 0
      %763 = vmatprep.subr.bf16.mxu0 0
      %764 = vmatpush2.bf16.msra.mxu0 0
      %765 = vmatprep.subr.bf16.mxu0 0
      %766 = vmatpush2.bf16.msra.mxu0 0
      %767 = vmatprep.subr.bf16.mxu0 0
      %768 = vmatpush2.bf16.msra.mxu0 0
      %769 = vmatprep.subr.bf16.mxu0 0
      %770 = vmatpush2.bf16.msra.mxu0 0
      %771 = vmatprep.subr.bf16.mxu0 0
      %772 = vmatpush2.bf16.msra.mxu0 0
      %773 = vmatprep.subr.bf16.mxu0 0
      %774 = vmatpush2.bf16.msra.mxu0 0
      %775 = vmatprep.subr.bf16.mxu0 0
      %776 = vmatpush2.bf16.msra.mxu0 0
      %777 = vmatprep.mubr.bf16.mxu0 0
      %778 = vmatmul.mubr.bf16.gmra.mxu0 %v736
      %v779 = vpop.f32.mrf.mxu0
      %v780 = vadd.f32 0.0, %v779
      %v781 = vpop.f32.mrf.mxu0
      %v782 = vpop.f32.mrf.mxu0
      %v783 = vadd.f32 0.0, %v782
      %v784 = vpop.f32.mrf.mxu0
      %785 = vmatprep.mubr.bf16.mxu0 0
      %786 = vmatmul.mubr.bf16.gmra.mxu0 %v739
      %v787 = vpop.f32.mrf.mxu0
      %v788 = vadd.f32 0.0, %v787
      %v789 = vpop.f32.mrf.mxu0
      %v790 = vpop.f32.mrf.mxu0
      %v791 = vadd.f32 0.0, %v790
      %v792 = vpop.f32.mrf.mxu0
      %793 = vdwg.mxu0
      %v794 = vmul.f32 %v780, %v601
      %v795 = vmul.f32 %v783, %v605
      %v796 = vmul.f32 %v788, %v609
      %v797 = vmul.f32 %v791, %v613
      %v798 = vsel %vm554, %v794, 0.0
      %v799 = vsel %vm554, %v795, 0.0
      %v800 = vadd.f32 %v798, %v799
      %v801 = vsel %vm554, %v796, 0.0
      %v802 = vadd.f32 %v800, %v801
      %v803 = vsel %vm554, %v797, 0.0
      %v804 = vadd.f32 %v802, %v803
      %v805 = vpack.c.bf16 %v804, %v804
      %v807 = vlaneseq
      %v808 = vshrl.u32 %v807, 7
      %v809 = vsub.s32 0, %v808
      %v810 = vrot.slane %v518, %v809
      %v816 = vunpack.c.l.b16 %v514
      %v817 = vunpack.c.l.b16 %v515
      %v818 = vunpack.c.l.b16 %v516
      %v819 = vunpack.c.l.b16 %v517
      %v820 = vpack.c.b16 %v817, %v816
      %v821 = vpack.c.b16 %v819, %v818
      %v825 = vsel %vm554, %v805, 0
      %827 = vmatprep.subr.bf16.mxu0 0
      %828 = vmatpush1.bf16.msra.mxu0 0
      %829 = vmatprep.subr.bf16.mxu0 0
      %830 = vmatpush1.bf16.msra.mxu0 0
      %831 = vmatprep.subr.bf16.mxu0 0
      %832 = vmatpush1.bf16.msra.mxu0 0
      %833 = vmatprep.subr.bf16.mxu0 0
      %834 = vmatpush1.bf16.msra.mxu0 0
      %835 = vmatprep.subr.bf16.mxu0 0
      %836 = vmatpush1.bf16.msra.mxu0 0
      %837 = vmatprep.subr.bf16.mxu0 0
      %838 = vmatpush1.bf16.msra.mxu0 0
      %839 = vmatprep.subr.bf16.mxu0 0
      %840 = vmatpush1.bf16.msra.mxu0 %v821
      %841 = vmatprep.subr.bf16.mxu0 0
      %842 = vmatpush1.bf16.msra.mxu0 %v820
      %843 = vmatprep.subr.bf16.mxu0 0
      %844 = vmatpush2.bf16.msra.mxu0 0
      %845 = vmatprep.subr.bf16.mxu0 0
      %846 = vmatpush2.bf16.msra.mxu0 0
      %847 = vmatprep.subr.bf16.mxu0 0
      %848 = vmatpush2.bf16.msra.mxu0 0
      %849 = vmatprep.subr.bf16.mxu0 0
      %850 = vmatpush2.bf16.msra.mxu0 0
      %851 = vmatprep.subr.bf16.mxu0 0
      %852 = vmatpush2.bf16.msra.mxu0 0
      %853 = vmatprep.subr.bf16.mxu0 0
      %854 = vmatpush2.bf16.msra.mxu0 0
      %855 = vmatprep.subr.bf16.mxu0 0
      %856 = vmatpush2.bf16.msra.mxu0 0
      %857 = vmatprep.subr.bf16.mxu0 0
      %858 = vmatpush2.bf16.msra.mxu0 0
      %859 = vmatprep.mubr.bf16.mxu0 0
      %860 = vmatmul.mubr.bf16.gmra.mxu0 %v825
      %v861 = vpop.f32.mrf.mxu0
      %v862 = vadd.f32 %v810, %v861
      %v863 = vpop.f32.mrf.mxu0
      %v864 = vpop.f32.mrf.mxu0
      %v865 = vpop.f32.mrf.mxu0
      %866 = vdwg.mxu0
      %v867 = vadd.f32 %v862, %v481
      %v868 = vsel %vm554, %v867, 0.0
      %869 = vadd.xlane.f32.xlu0 %v868
      %v870 = vpop.xlane.xlu0 %869
      %v871 = vrcp.pop 32.0
      %v872 = vmul.f32 %v870, %v871
      %v873 = vmul.f32 %v867, %v867
      %v874 = vsel %vm554, %v873, 0.0
      %875 = vadd.xlane.f32.xlu0 %v874
      %v876 = vpop.xlane.xlu0 %875
      %v877 = vmul.f32 %v876, %v871
      %v878 = vmul.f32 %v872, %v872
      %v879 = vsub.f32 %v877, %v878
      %v880 = vsub.f32 %v867, %v872
      %v881 = vadd.f32 %v879, 1e-05
      %v882 = vrsqrt.pop %v881
      %v883 = vmul.f32 %v880, %v882
      %v885 = vlaneseq
      %v886 = vshrl.u32 %v885, 7
      %v887 = vsub.s32 0, %v886
      %v888 = vrot.slane %v519, %v887
      %v890 = vmul.f32 %v883, %v888
      %v892 = vlaneseq
      %v893 = vshrl.u32 %v892, 7
      %v894 = vsub.s32 0, %v893
      %v895 = vrot.slane %v520, %v894
      %v897 = vadd.f32 %v890, %v895
      %v898 = vpack.c.bf16 %v897, %v897
      %v900 = vlaneseq
      %v901 = vshrl.u32 %v900, 7
      %v902 = vsub.s32 0, %v901
      %v903 = vrot.slane %v525, %v902
      %v909 = vunpack.c.l.b16 %v521
      %v910 = vunpack.c.l.b16 %v522
      %v911 = vunpack.c.l.b16 %v523
      %v912 = vunpack.c.l.b16 %v524
      %v913 = vpack.c.b16 %v910, %v909
      %v914 = vpack.c.b16 %v912, %v911
      %v918 = vsel %vm554, %v898, 0
      %920 = vmatprep.subr.bf16.mxu0 0
      %921 = vmatpush1.bf16.msra.mxu0 0
      %922 = vmatprep.subr.bf16.mxu0 0
      %923 = vmatpush1.bf16.msra.mxu0 0
      %924 = vmatprep.subr.bf16.mxu0 0
      %925 = vmatpush1.bf16.msra.mxu0 0
      %926 = vmatprep.subr.bf16.mxu0 0
      %927 = vmatpush1.bf16.msra.mxu0 0
      %928 = vmatprep.subr.bf16.mxu0 0
      %929 = vmatpush1.bf16.msra.mxu0 0
      %930 = vmatprep.subr.bf16.mxu0 0
      %931 = vmatpush1.bf16.msra.mxu0 0
      %932 = vmatprep.subr.bf16.mxu0 0
      %933 = vmatpush1.bf16.msra.mxu0 %v914
      %934 = vmatprep.subr.bf16.mxu0 0
      %935 = vmatpush1.bf16.msra.mxu0 %v913
      %936 = vmatprep.subr.bf16.mxu0 0
      %937 = vmatpush2.bf16.msra.mxu0 0
      %938 = vmatprep.subr.bf16.mxu0 0
      %939 = vmatpush2.bf16.msra.mxu0 0
      %940 = vmatprep.subr.bf16.mxu0 0
      %941 = vmatpush2.bf16.msra.mxu0 0
      %942 = vmatprep.subr.bf16.mxu0 0
      %943 = vmatpush2.bf16.msra.mxu0 0
      %944 = vmatprep.subr.bf16.mxu0 0
      %945 = vmatpush2.bf16.msra.mxu0 0
      %946 = vmatprep.subr.bf16.mxu0 0
      %947 = vmatpush2.bf16.msra.mxu0 0
      %948 = vmatprep.subr.bf16.mxu0 0
      %949 = vmatpush2.bf16.msra.mxu0 0
      %950 = vmatprep.subr.bf16.mxu0 0
      %951 = vmatpush2.bf16.msra.mxu0 0
      %952 = vmatprep.mubr.bf16.mxu0 0
      %953 = vmatmul.mubr.bf16.gmra.mxu0 %v918
      %v954 = vpop.f32.mrf.mxu0
      %v955 = vadd.f32 %v903, %v954
      %v956 = vpop.f32.mrf.mxu0
      %v957 = vpop.f32.mrf.mxu0
      %v958 = vpop.f32.mrf.mxu0
      %959 = vdwg.mxu0
      %v960 = vmax.f32 %v955, 0.0
      %v961 = vpack.c.bf16 %v960, %v960
      %v963 = vlaneseq
      %v964 = vshrl.u32 %v963, 7
      %v965 = vsub.s32 0, %v964
      %v966 = vrot.slane %v534, %v965
      %v976 = vunpack.c.l.b16 %v526
      %v977 = vunpack.c.l.b16 %v527
      %v978 = vunpack.c.l.b16 %v528
      %v979 = vunpack.c.l.b16 %v529
      %v980 = vunpack.c.l.b16 %v530
      %v981 = vunpack.c.l.b16 %v531
      %v982 = vunpack.c.l.b16 %v532
      %v983 = vunpack.c.l.b16 %v533
      %v984 = vpack.c.b16 %v977, %v976
      %v985 = vpack.c.b16 %v979, %v978
      %v986 = vpack.c.b16 %v981, %v980
      %v987 = vpack.c.b16 %v983, %v982
      %vm992 = vcmask 523264
      %v994 = vsel %vm992, %v961, 0
      %996 = vmatprep.subr.bf16.mxu0 0
      %997 = vmatpush1.bf16.msra.mxu0 0
      %998 = vmatprep.subr.bf16.mxu0 0
      %999 = vmatpush1.bf16.msra.mxu0 0
      %1000 = vmatprep.subr.bf16.mxu0 0
      %1001 = vmatpush1.bf16.msra.mxu0 0
      %1002 = vmatprep.subr.bf16.mxu0 0
      %1003 = vmatpush1.bf16.msra.mxu0 0
      %1004 = vmatprep.subr.bf16.mxu0 0
      %1005 = vmatpush1.bf16.msra.mxu0 %v987
      %1006 = vmatprep.subr.bf16.mxu0 0
      %1007 = vmatpush1.bf16.msra.mxu0 %v986
      %1008 = vmatprep.subr.bf16.mxu0 0
      %1009 = vmatpush1.bf16.msra.mxu0 %v985
      %1010 = vmatprep.subr.bf16.mxu0 0
      %1011 = vmatpush1.bf16.msra.mxu0 %v984
      %1012 = vmatprep.subr.bf16.mxu0 0
      %1013 = vmatpush2.bf16.msra.mxu0 0
      %1014 = vmatprep.subr.bf16.mxu0 0
      %1015 = vmatpush2.bf16.msra.mxu0 0
      %1016 = vmatprep.subr.bf16.mxu0 0
      %1017 = vmatpush2.bf16.msra.mxu0 0
      %1018 = vmatprep.subr.bf16.mxu0 0
      %1019 = vmatpush2.bf16.msra.mxu0 0
      %1020 = vmatprep.subr.bf16.mxu0 0
      %1021 = vmatpush2.bf16.msra.mxu0 0
      %1022 = vmatprep.subr.bf16.mxu0 0
      %1023 = vmatpush2.bf16.msra.mxu0 0
      %1024 = vmatprep.subr.bf16.mxu0 0
      %1025 = vmatpush2.bf16.msra.mxu0 0
      %1026 = vmatprep.subr.bf16.mxu0 0
      %1027 = vmatpush2.bf16.msra.mxu0 0
      %1028 = vmatprep.mubr.bf16.mxu0 0
      %1029 = vmatmul.mubr.bf16.gmra.mxu0 %v994
      %v1030 = vpop.f32.mrf.mxu0
      %v1031 = vadd.f32 %v966, %v1030
      %v1032 = vpop.f32.mrf.mxu0
      %v1033 = vpop.f32.mrf.mxu0
      %v1034 = vpop.f32.mrf.mxu0
      %1035 = vdwg.mxu0
      %v1036 = vadd.f32 %v1031, %v897
      %v1037 = vsel %vm554, %v1036, 0.0
      %1038 = vadd.xlane.f32.xlu0 %v1037
      %v1039 = vpop.xlane.xlu0 %1038
      %v1040 = vmul.f32 %v1039, %v871
      %v1041 = vmul.f32 %v1036, %v1036
      %v1042 = vsel %vm554, %v1041, 0.0
      %1043 = vadd.xlane.f32.xlu0 %v1042
      %v1044 = vpop.xlane.xlu0 %1043
      %v1045 = vmul.f32 %v1044, %v871
      %v1046 = vmul.f32 %v1040, %v1040
      %v1047 = vsub.f32 %v1045, %v1046
      %v1048 = vsub.f32 %v1036, %v1040
      %v1049 = vadd.f32 %v1047, 1e-05
      %v1050 = vrsqrt.pop %v1049
      %v1051 = vmul.f32 %v1048, %v1050
      %v1052 = vmul.f32 %v1051, %v888
      %v1053 = vadd.f32 %v1052, %v895
      %s1054 = scalar_lea.vmem %s3, 16
      %v1055 = vld [vmem:[%s1054] sm:$0xf]
      %v1056 = vld [vmem:[%s1054 + $0x4] sm:$0xf]
      %v1057 = vld [vmem:[%s1054 + $0x8] sm:$0xf]
      %v1058 = vld [vmem:[%s1054 + $0xc] sm:$0xf]
      %s1059 = scalar_lea.vmem %s4, 1
      %v1060 = vld [vmem:[%s1059] sm:$0x1]
      %s1061 = scalar_lea.vmem %s5, 16
      %v1062 = vld [vmem:[%s1061] sm:$0xf]
      %v1063 = vld [vmem:[%s1061 + $0x4] sm:$0xf]
      %v1064 = vld [vmem:[%s1061 + $0x8] sm:$0xf]
      %v1065 = vld [vmem:[%s1061 + $0xc] sm:$0xf]
      %s1066 = scalar_lea.vmem %s6, 1
      %v1067 = vld [vmem:[%s1066] sm:$0x1]
      %s1068 = scalar_lea.vmem %s7, 1
      %v1069 = vld [vmem:[%s1068] sm:$0x1]
      %s1070 = scalar_lea.vmem %s8, 1
      %v1071 = vld [vmem:[%s1070] sm:$0x1]
      %s1072 = scalar_lea.vmem %s9, 16
      %v1073 = vld [vmem:[%s1072] sm:$0xf]
      %v1074 = vld [vmem:[%s1072 + $0x4] sm:$0xf]
      %v1075 = vld [vmem:[%s1072 + $0x8] sm:$0xf]
      %v1076 = vld [vmem:[%s1072 + $0xc] sm:$0xf]
      %s1077 = scalar_lea.vmem %s10, 1
      %v1078 = vld [vmem:[%s1077] sm:$0x1]
      %s1079 = scalar_lea.vmem %s11, 32
      %v1080 = vld [vmem:[%s1079] sm:$0xf]
      %v1081 = vld [vmem:[%s1079 + $0x4] sm:$0xf]
      %v1082 = vld [vmem:[%s1079 + $0x8] sm:$0xf]
      %v1083 = vld [vmem:[%s1079 + $0xc] sm:$0xf]
      %v1084 = vld [vmem:[%s1079 + $0x10] sm:$0xf]
      %v1085 = vld [vmem:[%s1079 + $0x14] sm:$0xf]
      %v1086 = vld [vmem:[%s1079 + $0x18] sm:$0xf]
      %v1087 = vld [vmem:[%s1079 + $0x1c] sm:$0xf]
      %s1088 = scalar_lea.vmem %s12, 1
      %v1089 = vld [vmem:[%s1088] sm:$0x1]
      %v1090 = vpack.c.bf16 %v1053, %v1053
      %v1092 = vlaneseq
      %v1093 = vshrl.u32 %v1092, 7
      %v1094 = vsub.s32 0, %v1093
      %v1095 = vrot.slane %v1060, %v1094
      %v1101 = vunpack.c.l.b16 %v1055
      %v1102 = vunpack.c.l.b16 %v1056
      %v1103 = vunpack.c.l.b16 %v1057
      %v1104 = vunpack.c.l.b16 %v1058
      %v1105 = vpack.c.b16 %v1102, %v1101
      %v1106 = vpack.c.b16 %v1104, %v1103
      %v1110 = vsel %vm554, %v1090, 0
      %1112 = vmatprep.subr.bf16.mxu0 0
      %1113 = vmatpush1.bf16.msra.mxu0 0
      %1114 = vmatprep.subr.bf16.mxu0 0
      %1115 = vmatpush1.bf16.msra.mxu0 0
      %1116 = vmatprep.subr.bf16.mxu0 0
      %1117 = vmatpush1.bf16.msra.mxu0 0
      %1118 = vmatprep.subr.bf16.mxu0 0
      %1119 = vmatpush1.bf16.msra.mxu0 0
      %1120 = vmatprep.subr.bf16.mxu0 0
      %1121 = vmatpush1.bf16.msra.mxu0 0
      %1122 = vmatprep.subr.bf16.mxu0 0
      %1123 = vmatpush1.bf16.msra.mxu0 0
      %1124 = vmatprep.subr.bf16.mxu0 0
      %1125 = vmatpush1.bf16.msra.mxu0 %v1106
      %1126 = vmatprep.subr.bf16.mxu0 0
      %1127 = vmatpush1.bf16.msra.mxu0 %v1105
      %1128 = vmatprep.subr.bf16.mxu0 0
      %1129 = vmatpush2.bf16.msra.mxu0 0
      %1130 = vmatprep.subr.bf16.mxu0 0
      %1131 = vmatpush2.bf16.msra.mxu0 0
      %1132 = vmatprep.subr.bf16.mxu0 0
      %1133 = vmatpush2.bf16.msra.mxu0 0
      %1134 = vmatprep.subr.bf16.mxu0 0
      %1135 = vmatpush2.bf16.msra.mxu0 0
      %1136 = vmatprep.subr.bf16.mxu0 0
      %1137 = vmatpush2.bf16.msra.mxu0 0
      %1138 = vmatprep.subr.bf16.mxu0 0
      %1139 = vmatpush2.bf16.msra.mxu0 0
      %1140 = vmatprep.subr.bf16.mxu0 0
      %1141 = vmatpush2.bf16.msra.mxu0 0
      %1142 = vmatprep.subr.bf16.mxu0 0
      %1143 = vmatpush2.bf16.msra.mxu0 0
      %1144 = vmatprep.mubr.bf16.mxu0 0
      %1145 = vmatmul.mubr.bf16.gmra.mxu0 %v1110
      %v1146 = vpop.f32.mrf.mxu0
      %v1147 = vadd.f32 %v1095, %v1146
      %v1148 = vpop.f32.mrf.mxu0
      %v1149 = vpop.f32.mrf.mxu0
      %v1150 = vpop.f32.mrf.mxu0
      %1151 = vdwg.mxu0
      %v1152 = vmul.f32 %v1147, %v601
      %v1153 = vmul.f32 %v1147, %v605
      %v1154 = vmul.f32 %v1147, %v609
      %v1155 = vmul.f32 %v1147, %v613
      %v1156 = vpack.c.bf16 %v1153, %v1152
      %v1157 = vpack.c.bf16 %v1155, %v1154
      %v1158 = vpack.c.bf16 %v1147, %v1147
      %1160 = vrot.lane.b32.xlu0 %v1158, 96
      %v1161 = vpop.permute.xlu0 %1160
      %v1163 = vsel %vm554, %v1156, 0
      %v1166 = vsel %vm554, %v1157, 0
      %v1169 = vsel %vm554, %v1161, 0
      %1171 = vmatprep.subr.bf16.mxu0 0
      %1172 = vmatpush1.bf16.xpose.msra.mxu0 0
      %1173 = vmatprep.subr.bf16.mxu0 0
      %1174 = vmatpush1.bf16.xpose.msra.mxu0 0
      %1175 = vmatprep.subr.bf16.mxu0 0
      %1176 = vmatpush1.bf16.xpose.msra.mxu0 0
      %1177 = vmatprep.subr.bf16.mxu0 0
      %1178 = vmatpush1.bf16.xpose.msra.mxu0 0
      %1179 = vmatprep.subr.bf16.mxu0 0
      %1180 = vmatpush1.bf16.xpose.msra.mxu0 0
      %1181 = vmatprep.subr.bf16.mxu0 0
      %1182 = vmatpush1.bf16.xpose.msra.mxu0 0
      %1183 = vmatprep.subr.bf16.mxu0 0
      %1184 = vmatpush1.bf16.xpose.msra.mxu0 0
      %1185 = vmatprep.subr.bf16.mxu0 0
      %1186 = vmatpush1.bf16.xpose.msra.mxu0 %v1169
      %1187 = vmatprep.subr.bf16.mxu0 0
      %1188 = vmatpush2.bf16.xpose.msra.mxu0 0
      %1189 = vmatprep.subr.bf16.mxu0 0
      %1190 = vmatpush2.bf16.xpose.msra.mxu0 0
      %1191 = vmatprep.subr.bf16.mxu0 0
      %1192 = vmatpush2.bf16.xpose.msra.mxu0 0
      %1193 = vmatprep.subr.bf16.mxu0 0
      %1194 = vmatpush2.bf16.xpose.msra.mxu0 0
      %1195 = vmatprep.subr.bf16.mxu0 0
      %1196 = vmatpush2.bf16.xpose.msra.mxu0 0
      %1197 = vmatprep.subr.bf16.mxu0 0
      %1198 = vmatpush2.bf16.xpose.msra.mxu0 0
      %1199 = vmatprep.subr.bf16.mxu0 0
      %1200 = vmatpush2.bf16.xpose.msra.mxu0 0
      %1201 = vmatprep.subr.bf16.mxu0 0
      %1202 = vmatpush2.bf16.xpose.msra.mxu0 0
      %1203 = vmatprep.mubr.bf16.mxu0 0
      %1204 = vmatmul.mubr.bf16.gmra.mxu0 %v1163
      %v1205 = vpop.f32.mrf.mxu0
      %v1206 = vadd.f32 %v482, %v1205
      %v1207 = vpop.f32.mrf.mxu0
      %v1208 = vpop.f32.mrf.mxu0
      %v1209 = vadd.f32 %v482, %v1208
      %v1210 = vpop.f32.mrf.mxu0
      %1211 = vmatprep.mubr.bf16.mxu0 0
      %1212 = vmatmul.mubr.bf16.gmra.mxu0 %v1166
      %v1213 = vpop.f32.mrf.mxu0
      %v1214 = vadd.f32 %v482, %v1213
      %v1215 = vpop.f32.mrf.mxu0
      %v1216 = vpop.f32.mrf.mxu0
      %v1217 = vadd.f32 %v482, %v1216
      %v1218 = vpop.f32.mrf.mxu0
      %1219 = vdwg.mxu0
      %v1220 = vsel %vm686, %v1206, -inf
      %1221 = vmax.xlane.f32.xlu0 %v1220
      %v1222 = vpop.xlane.xlu0 %1221
      %v1223 = vsel %vm686, %v1209, -inf
      %1224 = vmax.xlane.f32.xlu0 %v1223
      %v1225 = vpop.xlane.xlu0 %1224
      %v1226 = vsel %vm686, %v1214, -inf
      %1227 = vmax.xlane.f32.xlu0 %v1226
      %v1228 = vpop.xlane.xlu0 %1227
      %v1229 = vsel %vm686, %v1217, -inf
      %1230 = vmax.xlane.f32.xlu0 %v1229
      %v1231 = vpop.xlane.xlu0 %1230
      %v1232 = vsub.f32 %v1206, %v1222
      %v1233 = vsub.f32 %v1209, %v1225
      %v1234 = vsub.f32 %v1214, %v1228
      %v1235 = vsub.f32 %v1217, %v1231
      %v1236 = vmul.f32 %v1232, 1.442695
      %v1237 = vpow.pop %v1236
      %v1238 = vmul.f32 %v1233, 1.442695
      %v1239 = vpow.pop %v1238
      %v1240 = vmul.f32 %v1234, 1.442695
      %v1241 = vpow.pop %v1240
      %v1242 = vmul.f32 %v1235, 1.442695
      %v1243 = vpow.pop %v1242
      %v1244 = vsel %vm686, %v1237, 0.0
      %1245 = vadd.xlane.f32.xlu0 %v1244
      %v1246 = vpop.xlane.xlu0 %1245
      %v1247 = vsel %vm686, %v1239, 0.0
      %1248 = vadd.xlane.f32.xlu0 %v1247
      %v1249 = vpop.xlane.xlu0 %1248
      %v1250 = vsel %vm686, %v1241, 0.0
      %1251 = vadd.xlane.f32.xlu0 %v1250
      %v1252 = vpop.xlane.xlu0 %1251
      %v1253 = vsel %vm686, %v1243, 0.0
      %1254 = vadd.xlane.f32.xlu0 %v1253
      %v1255 = vpop.xlane.xlu0 %1254
      %v1256 = vrcp.pop %v1246
      %v1257 = vrcp.pop %v1249
      %v1258 = vrcp.pop %v1252
      %v1259 = vrcp.pop %v1255
      %v1260 = vmul.f32 %v1237, %v1256
      %v1261 = vmul.f32 %v1239, %v1257
      %v1262 = vmul.f32 %v1241, %v1258
      %v1263 = vmul.f32 %v1243, %v1259
      %v1264 = vpack.c.bf16 %v1261, %v1260
      %v1265 = vpack.c.bf16 %v1263, %v1262
      %1266 = vrot.lane.b32.xlu0 %v1158, 64
      %v1267 = vpop.permute.xlu0 %1266
      %v1269 = vsel %vm686, %v1264, 0
      %v1272 = vsel %vm686, %v1265, 0
      %v1275 = vsel %vm741, %v1267, 0
      %1277 = vmatprep.subr.bf16.mxu0 0
      %1278 = vmatpush1.bf16.msra.mxu0 0
      %1279 = vmatprep.subr.bf16.mxu0 0
      %1280 = vmatpush1.bf16.msra.mxu0 0
      %1281 = vmatprep.subr.bf16.mxu0 0
      %1282 = vmatpush1.bf16.msra.mxu0 0
      %1283 = vmatprep.subr.bf16.mxu0 0
      %1284 = vmatpush1.bf16.msra.mxu0 0
      %1285 = vmatprep.subr.bf16.mxu0 0
      %1286 = vmatpush1.bf16.msra.mxu0 0
      %1287 = vmatprep.subr.bf16.mxu0 0
      %1288 = vmatpush1.bf16.msra.mxu0 0
      %1289 = vmatprep.subr.bf16.mxu0 0
      %1290 = vmatpush1.bf16.msra.mxu0 0
      %1291 = vmatprep.subr.bf16.mxu0 0
      %1292 = vmatpush1.bf16.msra.mxu0 %v1275
      %1293 = vmatprep.subr.bf16.mxu0 0
      %1294 = vmatpush2.bf16.msra.mxu0 0
      %1295 = vmatprep.subr.bf16.mxu0 0
      %1296 = vmatpush2.bf16.msra.mxu0 0
      %1297 = vmatprep.subr.bf16.mxu0 0
      %1298 = vmatpush2.bf16.msra.mxu0 0
      %1299 = vmatprep.subr.bf16.mxu0 0
      %1300 = vmatpush2.bf16.msra.mxu0 0
      %1301 = vmatprep.subr.bf16.mxu0 0
      %1302 = vmatpush2.bf16.msra.mxu0 0
      %1303 = vmatprep.subr.bf16.mxu0 0
      %1304 = vmatpush2.bf16.msra.mxu0 0
      %1305 = vmatprep.subr.bf16.mxu0 0
      %1306 = vmatpush2.bf16.msra.mxu0 0
      %1307 = vmatprep.subr.bf16.mxu0 0
      %1308 = vmatpush2.bf16.msra.mxu0 0
      %1309 = vmatprep.mubr.bf16.mxu0 0
      %1310 = vmatmul.mubr.bf16.gmra.mxu0 %v1269
      %v1311 = vpop.f32.mrf.mxu0
      %v1312 = vadd.f32 0.0, %v1311
      %v1313 = vpop.f32.mrf.mxu0
      %v1314 = vpop.f32.mrf.mxu0
      %v1315 = vadd.f32 0.0, %v1314
      %v1316 = vpop.f32.mrf.mxu0
      %1317 = vmatprep.mubr.bf16.mxu0 0
      %1318 = vmatmul.mubr.bf16.gmra.mxu0 %v1272
      %v1319 = vpop.f32.mrf.mxu0
      %v1320 = vadd.f32 0.0, %v1319
      %v1321 = vpop.f32.mrf.mxu0
      %v1322 = vpop.f32.mrf.mxu0
      %v1323 = vadd.f32 0.0, %v1322
      %v1324 = vpop.f32.mrf.mxu0
      %1325 = vdwg.mxu0
      %v1326 = vmul.f32 %v1312, %v601
      %v1327 = vmul.f32 %v1315, %v605
      %v1328 = vmul.f32 %v1320, %v609
      %v1329 = vmul.f32 %v1323, %v613
      %v1330 = vsel %vm554, %v1326, 0.0
      %v1331 = vsel %vm554, %v1327, 0.0
      %v1332 = vadd.f32 %v1330, %v1331
      %v1333 = vsel %vm554, %v1328, 0.0
      %v1334 = vadd.f32 %v1332, %v1333
      %v1335 = vsel %vm554, %v1329, 0.0
      %v1336 = vadd.f32 %v1334, %v1335
      %v1337 = vpack.c.bf16 %v1336, %v1336
      %v1339 = vlaneseq
      %v1340 = vshrl.u32 %v1339, 7
      %v1341 = vsub.s32 0, %v1340
      %v1342 = vrot.slane %v1067, %v1341
      %v1348 = vunpack.c.l.b16 %v1062
      %v1349 = vunpack.c.l.b16 %v1063
      %v1350 = vunpack.c.l.b16 %v1064
      %v1351 = vunpack.c.l.b16 %v1065
      %v1352 = vpack.c.b16 %v1349, %v1348
      %v1353 = vpack.c.b16 %v1351, %v1350
      %v1357 = vsel %vm554, %v1337, 0
      %1359 = vmatprep.subr.bf16.mxu0 0
      %1360 = vmatpush1.bf16.msra.mxu0 0
      %1361 = vmatprep.subr.bf16.mxu0 0
      %1362 = vmatpush1.bf16.msra.mxu0 0
      %1363 = vmatprep.subr.bf16.mxu0 0
      %1364 = vmatpush1.bf16.msra.mxu0 0
      %1365 = vmatprep.subr.bf16.mxu0 0
      %1366 = vmatpush1.bf16.msra.mxu0 0
      %1367 = vmatprep.subr.bf16.mxu0 0
      %1368 = vmatpush1.bf16.msra.mxu0 0
      %1369 = vmatprep.subr.bf16.mxu0 0
      %1370 = vmatpush1.bf16.msra.mxu0 0
      %1371 = vmatprep.subr.bf16.mxu0 0
      %1372 = vmatpush1.bf16.msra.mxu0 %v1353
      %1373 = vmatprep.subr.bf16.mxu0 0
      %1374 = vmatpush1.bf16.msra.mxu0 %v1352
      %1375 = vmatprep.subr.bf16.mxu0 0
      %1376 = vmatpush2.bf16.msra.mxu0 0
      %1377 = vmatprep.subr.bf16.mxu0 0
      %1378 = vmatpush2.bf16.msra.mxu0 0
      %1379 = vmatprep.subr.bf16.mxu0 0
      %1380 = vmatpush2.bf16.msra.mxu0 0
      %1381 = vmatprep.subr.bf16.mxu0 0
      %1382 = vmatpush2.bf16.msra.mxu0 0
      %1383 = vmatprep.subr.bf16.mxu0 0
      %1384 = vmatpush2.bf16.msra.mxu0 0
      %1385 = vmatprep.subr.bf16.mxu0 0
      %1386 = vmatpush2.bf16.msra.mxu0 0
      %1387 = vmatprep.subr.bf16.mxu0 0
      %1388 = vmatpush2.bf16.msra.mxu0 0
      %1389 = vmatprep.subr.bf16.mxu0 0
      %1390 = vmatpush2.bf16.msra.mxu0 0
      %1391 = vmatprep.mubr.bf16.mxu0 0
      %1392 = vmatmul.mubr.bf16.gmra.mxu0 %v1357
      %v1393 = vpop.f32.mrf.mxu0
      %v1394 = vadd.f32 %v1342, %v1393
      %v1395 = vpop.f32.mrf.mxu0
      %v1396 = vpop.f32.mrf.mxu0
      %v1397 = vpop.f32.mrf.mxu0
      %1398 = vdwg.mxu0
      %v1399 = vadd.f32 %v1394, %v1053
      %v1400 = vsel %vm554, %v1399, 0.0
      %1401 = vadd.xlane.f32.xlu0 %v1400
      %v1402 = vpop.xlane.xlu0 %1401
      %v1403 = vmul.f32 %v1402, %v871
      %v1404 = vmul.f32 %v1399, %v1399
      %v1405 = vsel %vm554, %v1404, 0.0
      %1406 = vadd.xlane.f32.xlu0 %v1405
      %v1407 = vpop.xlane.xlu0 %1406
      %v1408 = vmul.f32 %v1407, %v871
      %v1409 = vmul.f32 %v1403, %v1403
      %v1410 = vsub.f32 %v1408, %v1409
      %v1411 = vsub.f32 %v1399, %v1403
      %v1412 = vadd.f32 %v1410, 1e-05
      %v1413 = vrsqrt.pop %v1412
      %v1414 = vmul.f32 %v1411, %v1413
      %v1416 = vlaneseq
      %v1417 = vshrl.u32 %v1416, 7
      %v1418 = vsub.s32 0, %v1417
      %v1419 = vrot.slane %v1069, %v1418
      %v1421 = vmul.f32 %v1414, %v1419
      %v1423 = vlaneseq
      %v1424 = vshrl.u32 %v1423, 7
      %v1425 = vsub.s32 0, %v1424
      %v1426 = vrot.slane %v1071, %v1425
      %v1428 = vadd.f32 %v1421, %v1426
      %v1429 = vpack.c.bf16 %v1428, %v1428
      %v1431 = vlaneseq
      %v1432 = vshrl.u32 %v1431, 7
      %v1433 = vsub.s32 0, %v1432
      %v1434 = vrot.slane %v1078, %v1433
      %v1440 = vunpack.c.l.b16 %v1073
      %v1441 = vunpack.c.l.b16 %v1074
      %v1442 = vunpack.c.l.b16 %v1075
      %v1443 = vunpack.c.l.b16 %v1076
      %v1444 = vpack.c.b16 %v1441, %v1440
      %v1445 = vpack.c.b16 %v1443, %v1442
      %v1449 = vsel %vm554, %v1429, 0
      %1451 = vmatprep.subr.bf16.mxu0 0
      %1452 = vmatpush1.bf16.msra.mxu0 0
      %1453 = vmatprep.subr.bf16.mxu0 0
      %1454 = vmatpush1.bf16.msra.mxu0 0
      %1455 = vmatprep.subr.bf16.mxu0 0
      %1456 = vmatpush1.bf16.msra.mxu0 0
      %1457 = vmatprep.subr.bf16.mxu0 0
      %1458 = vmatpush1.bf16.msra.mxu0 0
      %1459 = vmatprep.subr.bf16.mxu0 0
      %1460 = vmatpush1.bf16.msra.mxu0 0
      %1461 = vmatprep.subr.bf16.mxu0 0
      %1462 = vmatpush1.bf16.msra.mxu0 0
      %1463 = vmatprep.subr.bf16.mxu0 0
      %1464 = vmatpush1.bf16.msra.mxu0 %v1445
      %1465 = vmatprep.subr.bf16.mxu0 0
      %1466 = vmatpush1.bf16.msra.mxu0 %v1444
      %1467 = vmatprep.subr.bf16.mxu0 0
      %1468 = vmatpush2.bf16.msra.mxu0 0
      %1469 = vmatprep.subr.bf16.mxu0 0
      %1470 = vmatpush2.bf16.msra.mxu0 0
      %1471 = vmatprep.subr.bf16.mxu0 0
      %1472 = vmatpush2.bf16.msra.mxu0 0
      %1473 = vmatprep.subr.bf16.mxu0 0
      %1474 = vmatpush2.bf16.msra.mxu0 0
      %1475 = vmatprep.subr.bf16.mxu0 0
      %1476 = vmatpush2.bf16.msra.mxu0 0
      %1477 = vmatprep.subr.bf16.mxu0 0
      %1478 = vmatpush2.bf16.msra.mxu0 0
      %1479 = vmatprep.subr.bf16.mxu0 0
      %1480 = vmatpush2.bf16.msra.mxu0 0
      %1481 = vmatprep.subr.bf16.mxu0 0
      %1482 = vmatpush2.bf16.msra.mxu0 0
      %1483 = vmatprep.mubr.bf16.mxu0 0
      %1484 = vmatmul.mubr.bf16.gmra.mxu0 %v1449
      %v1485 = vpop.f32.mrf.mxu0
      %v1486 = vadd.f32 %v1434, %v1485
      %v1487 = vpop.f32.mrf.mxu0
      %v1488 = vpop.f32.mrf.mxu0
      %v1489 = vpop.f32.mrf.mxu0
      %1490 = vdwg.mxu0
      %v1491 = vmax.f32 %v1486, 0.0
      %v1492 = vpack.c.bf16 %v1491, %v1491
      %v1494 = vlaneseq
      %v1495 = vshrl.u32 %v1494, 7
      %v1496 = vsub.s32 0, %v1495
      %v1497 = vrot.slane %v1089, %v1496
      %v1507 = vunpack.c.l.b16 %v1080
      %v1508 = vunpack.c.l.b16 %v1081
      %v1509 = vunpack.c.l.b16 %v1082
      %v1510 = vunpack.c.l.b16 %v1083
      %v1511 = vunpack.c.l.b16 %v1084
      %v1512 = vunpack.c.l.b16 %v1085
      %v1513 = vunpack.c.l.b16 %v1086
      %v1514 = vunpack.c.l.b16 %v1087
      %v1515 = vpack.c.b16 %v1508, %v1507
      %v1516 = vpack.c.b16 %v1510, %v1509
      %v1517 = vpack.c.b16 %v1512, %v1511
      %v1518 = vpack.c.b16 %v1514, %v1513
      %v1524 = vsel %vm992, %v1492, 0
      %1526 = vmatprep.subr.bf16.mxu0 0
      %1527 = vmatpush1.bf16.msra.mxu0 0
      %1528 = vmatprep.subr.bf16.mxu0 0
      %1529 = vmatpush1.bf16.msra.mxu0 0
      %1530 = vmatprep.subr.bf16.mxu0 0
      %1531 = vmatpush1.bf16.msra.mxu0 0
      %1532 = vmatprep.subr.bf16.mxu0 0
      %1533 = vmatpush1.bf16.msra.mxu0 0
      %1534 = vmatprep.subr.bf16.mxu0 0
      %1535 = vmatpush1.bf16.msra.mxu0 %v1518
      %1536 = vmatprep.subr.bf16.mxu0 0
      %1537 = vmatpush1.bf16.msra.mxu0 %v1517
      %1538 = vmatprep.subr.bf16.mxu0 0
      %1539 = vmatpush1.bf16.msra.mxu0 %v1516
      %1540 = vmatprep.subr.bf16.mxu0 0
      %1541 = vmatpush1.bf16.msra.mxu0 %v1515
      %1542 = vmatprep.subr.bf16.mxu0 0
      %1543 = vmatpush2.bf16.msra.mxu0 0
      %1544 = vmatprep.subr.bf16.mxu0 0
      %1545 = vmatpush2.bf16.msra.mxu0 0
      %1546 = vmatprep.subr.bf16.mxu0 0
      %1547 = vmatpush2.bf16.msra.mxu0 0
      %1548 = vmatprep.subr.bf16.mxu0 0
      %1549 = vmatpush2.bf16.msra.mxu0 0
      %1550 = vmatprep.subr.bf16.mxu0 0
      %1551 = vmatpush2.bf16.msra.mxu0 0
      %1552 = vmatprep.subr.bf16.mxu0 0
      %1553 = vmatpush2.bf16.msra.mxu0 0
      %1554 = vmatprep.subr.bf16.mxu0 0
      %1555 = vmatpush2.bf16.msra.mxu0 0
      %1556 = vmatprep.subr.bf16.mxu0 0
      %1557 = vmatpush2.bf16.msra.mxu0 0
      %1558 = vmatprep.mubr.bf16.mxu0 0
      %1559 = vmatmul.mubr.bf16.gmra.mxu0 %v1524
      %v1560 = vpop.f32.mrf.mxu0
      %v1561 = vadd.f32 %v1497, %v1560
      %v1562 = vpop.f32.mrf.mxu0
      %v1563 = vpop.f32.mrf.mxu0
      %v1564 = vpop.f32.mrf.mxu0
      %1565 = vdwg.mxu0
      %v1566 = vadd.f32 %v1561, %v1428
      %v1567 = vsel %vm554, %v1566, 0.0
      %1568 = vadd.xlane.f32.xlu0 %v1567
      %v1569 = vpop.xlane.xlu0 %1568
      %v1570 = vmul.f32 %v1569, %v871
      %v1571 = vmul.f32 %v1566, %v1566
      %v1572 = vsel %vm554, %v1571, 0.0
      %1573 = vadd.xlane.f32.xlu0 %v1572
      %v1574 = vpop.xlane.xlu0 %1573
      %v1575 = vmul.f32 %v1574, %v871
      %v1576 = vmul.f32 %v1570, %v1570
      %v1577 = vsub.f32 %v1575, %v1576
      %v1578 = vsub.f32 %v1566, %v1570
      %v1579 = vadd.f32 %v1577, 1e-05
      %v1580 = vrsqrt.pop %v1579
      %v1581 = vmul.f32 %v1578, %v1580
      %v1582 = vmul.f32 %v1581, %v1419
      %v1583 = vadd.f32 %v1582, %v1426
      %v1584 = vld [vmem:[%s13] sm:$0xf]
      %v1585 = vld [vmem:[%s13 + $0x4] sm:$0xf]
      %v1586 = vld [vmem:[%s13 + $0x8] sm:$0xf]
      %v1587 = vld [vmem:[%s13 + $0xc] sm:$0xf]
      %v1588 = vpack.c.bf16 %v1583, %v1583
      %v1593 = vunpack.c.l.b16 %v1584
      %v1594 = vunpack.c.l.b16 %v1585
      %v1595 = vunpack.c.l.b16 %v1586
      %v1596 = vunpack.c.l.b16 %v1587
      %v1597 = vpack.c.b16 %v1594, %v1593
      %v1598 = vpack.c.b16 %v1596, %v1595
      %v1602 = vsel %vm554, %v1588, 0
      %1604 = vmatprep.subr.bf16.mxu0 0
      %1605 = vmatpush1.bf16.msra.mxu0 0
      %1606 = vmatprep.subr.bf16.mxu0 0
      %1607 = vmatpush1.bf16.msra.mxu0 0
      %1608 = vmatprep.subr.bf16.mxu0 0
      %1609 = vmatpush1.bf16.msra.mxu0 0
      %1610 = vmatprep.subr.bf16.mxu0 0
      %1611 = vmatpush1.bf16.msra.mxu0 0
      %1612 = vmatprep.subr.bf16.mxu0 0
      %1613 = vmatpush1.bf16.msra.mxu0 0
      %1614 = vmatprep.subr.bf16.mxu0 0
      %1615 = vmatpush1.bf16.msra.mxu0 0
      %1616 = vmatprep.subr.bf16.mxu0 0
      %1617 = vmatpush1.bf16.msra.mxu0 %v1598
      %1618 = vmatprep.subr.bf16.mxu0 0
      %1619 = vmatpush1.bf16.msra.mxu0 %v1597
      %1620 = vmatprep.subr.bf16.mxu0 0
      %1621 = vmatpush2.bf16.msra.mxu0 0
      %1622 = vmatprep.subr.bf16.mxu0 0
      %1623 = vmatpush2.bf16.msra.mxu0 0
      %1624 = vmatprep.subr.bf16.mxu0 0
      %1625 = vmatpush2.bf16.msra.mxu0 0
      %1626 = vmatprep.subr.bf16.mxu0 0
      %1627 = vmatpush2.bf16.msra.mxu0 0
      %1628 = vmatprep.subr.bf16.mxu0 0
      %1629 = vmatpush2.bf16.msra.mxu0 0
      %1630 = vmatprep.subr.bf16.mxu0 0
      %1631 = vmatpush2.bf16.msra.mxu0 0
      %1632 = vmatprep.subr.bf16.mxu0 0
      %1633 = vmatpush2.bf16.msra.mxu0 0
      %1634 = vmatprep.subr.bf16.mxu0 0
      %1635 = vmatpush2.bf16.msra.mxu0 0
      %1636 = vmatprep.mubr.bf16.mxu0 0
      %1637 = vmatmul.mubr.bf16.gmra.mxu0 %v1602
      %v1638 = vpop.f32.mrf.mxu0
      %v1639 = vadd.f32 0.0, %v1638
      %v1640 = vpop.f32.mrf.mxu0
      %v1641 = vpop.f32.mrf.mxu0
      %v1642 = vpop.f32.mrf.mxu0
      %1643 = vdwg.mxu0
      %1644 = vst [vmem:[%s479] sm:$0xff] %v1639
      %p1645 = scmp.lt.s32.totalorder %s25, 1
      %s1646 = scalar_select %p1645, %s25, 1
      %s1647 = smul.addr %s1646, 8
      %s1648 = scalar_lea.vmem %s14, %s1647
      // Predicated region
      $region77: #{transformer_dso_encoder_forward.1} parent=75 // pred_check
        %p1649 = pneg %p347
      $region78: #{transformer_dso_encoder_forward.1} parent=75 // pred_check_branch
        %1651 = sbr.rel (%p1649) target = $region80
      $region79: #{transformer_dso_encoder_forward.1} parent=75 // pred_region
        _
      $region80: #{transformer_dso_encoder_forward.1} parent=75 // pred_fallthru
        _
    $region76: #{transformer_dso_encoder_forward.1} parent=5 // pred_fallthru
      _
    %p1652 = scmp.le.s32.totalorder 2, %s20
    // Predicated region
    $region81: #{transformer_dso_encoder_forward.1} parent=5 // pred_check
      %p1653 = pneg %p1652
    $region82: #{transformer_dso_encoder_forward.1} parent=5 // pred_check_branch
      %1655 = sbr.rel (%p1653) target = $region84
    $region83: #{transformer_dso_encoder_forward.1} parent=5 // pred_region
      %s1656 = ssub.s32 %s20, 2
      // Predicated region
      $region85: #{transformer_dso_encoder_forward.1} parent=83 // pred_check
        %p1657 = pneg %p353
      $region86: #{transformer_dso_encoder_forward.1} parent=83 // pred_check_branch
        %1659 = sbr.rel (%p1657) target = $region88
      $region87: #{transformer_dso_encoder_forward.1} parent=83 // pred_region
        %p1660 = scmp.lt.s32.totalorder %s26, 1
        %s1661 = scalar_select %p1660, %s26, 1
        %s1662 = smul.addr %s1661, 8
        %s1663 = scalar_lea.vmem %s14, %s1662
      $region88: #{transformer_dso_encoder_forward.1} parent=83 // pred_fallthru
        _
    $region84: #{transformer_dso_encoder_forward.1} parent=5 // pred_fallthru
      _
  $region6: #{transformer_dso_encoder_forward.1} parent=0 // loop_footer
    %s24 = sadd.s32 1, %s20
  $region7: #{transformer_dso_encoder_forward.1} parent=0 // loop_footer_branch
    %19 = sbr.rel target = $region3
  $region8: #{transformer_dso_encoder_forward.1} parent=0 // loop_exit
    _

</llo_original>
